<compile_context>
chip_gen: v5e
topology: v5e:2x2
jax: 0.10.0
libtpu: 0.0.40
codegen_flags: <defaults>
</compile_context>

<pallas_src>
import functools

import numpy as np
import jax
import jax.numpy as jnp
from jax.experimental import pallas as pl
from jax.experimental.pallas import tpu as pltpu

_BN_EPS = 1e-5
_TAPS = tuple((dy, dx) for dy in range(3) for dx in range(3))


def _bilinear_matrix_align_corners(n_in, n_out):
    """1-D bilinear interpolation matrix A (n_out, n_in), align_corners=True."""
    j = np.arange(n_out)
    if n_out == 1:
        src = np.zeros(n_out, dtype=np.float64)
    else:
        src = j * (n_in - 1) / (n_out - 1)
    i0 = np.clip(np.floor(src).astype(np.int64), 0, n_in - 1)
    i1 = np.clip(i0 + 1, 0, n_in - 1)
    frac = src - i0
    a = np.zeros((n_out, n_in), dtype=np.float32)
    a[j, i0] += (1.0 - frac)
    a[j, i1] += frac
    return a


def _decoder_block_kernel(x_ref, skip_ref, bd_ref, mask_ref,
                          w1_ref, g1_ref, b1_ref, w2_ref, g2_ref, b2_ref,
                          out_ref, xpad_ref, slab_ref,
                          *, C1, C2, COUT, CS, W, NHW, PAD):
    """Single grid point; every operand is small and resident in VMEM."""
    CIN = C1 + C2

    # Zero only the flat halo strips of the shared padded buffer (once).  The
    # interior is fully overwritten before each conv stage; halos stay zero.
    halo = jnp.zeros((CS, PAD), jnp.float32)
    xpad_ref[:, :PAD] = halo
    xpad_ref[:, PAD + NHW:] = halo

    # ---- 1) bilinear x2 upsample (align_corners=True): one MXU matmul
    # against the block-diagonal kron(ah, aw) matrix + one lane-aligned store.
    up = jnp.dot(x_ref[...], bd_ref[...],
                 preferred_element_type=jnp.float32)          # (C1, N*HW)
    xpad_ref[:C1, PAD:PAD + NHW] = up
    # concat([up(x), skip], dim=1): skip occupies channels [C1:CIN).
    xpad_ref[C1:CIN, PAD:PAD + NHW] = skip_ref[...]

    # ---- shared Conv3x3(no bias) + BatchNorm2d(batch stats) + ReLU stage.
    def conv_bn_relu(cin, w_ref, g_ref, b_ref):
        # im2col: 9 lane-shifted, border-masked copies of the padded buffer,
        # written at CS-strided (sublane-tile aligned) slab slots, then ONE
        # fused matmul with K = 9*CS over all batches' lanes at once.
        for t, (dy, dx) in enumerate(_TAPS):
            start = PAD + (dy - 1) * W + (dx - 1)
            patch = xpad_ref[:cin, start:start + NHW]          # (cin, NHW)
            if (dy, dx) != (1, 1):                             # center needs no mask
                patch = patch * mask_ref[t:t + 1, :]
            slab_ref[t * CS:t * CS + cin, :] = patch
        y = jnp.dot(w_ref[...], slab_ref[...],
                    preferred_element_type=jnp.float32)        # (COUT, NHW)
        # BatchNorm2d training-mode: biased batch stats over (N, H, W) -- here
        # exactly the lane axis -- computed two-pass (centered).
        mean = jnp.mean(y, axis=1, keepdims=True)              # (COUT, 1)
        cen = y - mean
        var = jnp.mean(cen * cen, axis=1, keepdims=True)
        scale = g_ref[...] * jax.lax.rsqrt(var + _BN_EPS)      # (COUT, 1)
        return jnp.maximum(cen * scale + b_ref[...], 0.0)

    y1 = conv_bn_relu(CIN, w1_ref, g1_ref, b1_ref)             # (COUT, NHW)

    # Refill the SAME padded buffer for conv2 (halos already zero; conv2 only
    # reads channels [:COUT]).  Stale slab rows are killed by the zero rows of
    # the zero-padded conv2 weight matrix.
    xpad_ref[:COUT, PAD:PAD + NHW] = y1

    out_ref[...] = conv_bn_relu(COUT, w2_ref, g2_ref, b2_ref)


def init_decoder_block_params(key, in_channels, skip_channels, out_channels):
    """Deterministic synthetic parameters for DecoderBlock."""
    cin = in_channels + skip_channels
    k1, k2, k3, k4, k5, k6 = jax.random.split(key, 6)
    w1 = 0.2 * jax.random.normal(k1, (3, 3, cin, out_channels), jnp.float32)
    w2 = 0.2 * jax.random.normal(k2, (3, 3, out_channels, out_channels),
                                 jnp.float32)
    g1 = 1.0 + 0.1 * jax.random.normal(k3, (out_channels,), jnp.float32)
    b1 = 0.1 * jax.random.normal(k4, (out_channels,), jnp.float32)
    g2 = 1.0 + 0.1 * jax.random.normal(k5, (out_channels,), jnp.float32)
    b2 = 0.1 * jax.random.normal(k6, (out_channels,), jnp.float32)
    return dict(w1=w1, w2=w2, g1=g1, b1=b1, g2=g2, b2=b2,
                in_channels=in_channels, skip_channels=skip_channels,
                out_channels=out_channels)


def decoder_block_forward(x, skip, params):
    """DecoderBlock.forward(x, skip). Inputs/outputs are NCHW."""
    assert skip is not None  # TODO(synk): skip=None branch unimplemented.
    N, C1, H1, W1 = x.shape
    N2, C2, H, W = skip.shape
    assert N == N2 and H == 2 * H1 and W == 2 * W1
    assert C1 == params['in_channels'] and C2 == params['skip_channels']
    COUT = params['out_channels']
    CIN = C1 + C2
    CS = ((max(CIN, COUT) + 7) // 8) * 8     # sublane-tile aligned tap stride
    HW = H * W
    NHW = N * HW
    H1W1 = H1 * W1
    PAD = ((W + 1 + 127) // 128) * 128       # lane-aligned halo, >= W+1

    # Block-diagonal kron(ah, aw) upsample matrix: whole bilinear x2 upsample
    # (all batches) becomes a single (C1, N*H1W1) @ (N*H1W1, N*HW) matmul.
    ah = _bilinear_matrix_align_corners(H1, H)                 # (H, H1)
    aw = _bilinear_matrix_align_corners(W1, W)                 # (W, W1)
    kron_t = np.kron(ah, aw).T.astype(np.float32)              # (H1W1, HW)
    bd = np.zeros((N * H1W1, NHW), np.float32)
    for n in range(N):
        bd[n * H1W1:(n + 1) * H1W1, n * HW:(n + 1) * HW] = kron_t

    # Per-tap border-validity masks over the flat (N*H*W) lane axis.  They
    # implement the conv's 'SAME' zero padding AND cancel the row / batch
    # wrap-around introduced by the flat +-W, +-1 lane shifts.
    q = np.arange(NHW)
    col = q % W
    row = (q % HW) // W
    masks = np.ones((9, NHW), np.float32)
    for t, (dy, dx) in enumerate(_TAPS):
        mt = np.ones(NHW, np.float32)
        if dy == 0:
            mt = mt * (row != 0)
        if dy == 2:
            mt = mt * (row != H - 1)
        if dx == 0:
            mt = mt * (col != 0)
        if dx == 2:
            mt = mt * (col != W - 1)
        masks[t] = mt

    # Tap-major fused conv weights (COUT, 9*CS); unused K rows are zero.
    def pack_w(w, cin):
        wt = np.asarray(w).transpose(3, 0, 1, 2).reshape(COUT, 9, cin)
        wp = np.zeros((COUT, 9, CS), np.float32)
        wp[:, :, :cin] = wt
        return wp.reshape(COUT, 9 * CS)

    w1m = jnp.asarray(pack_w(params['w1'], CIN))
    w2m = jnp.asarray(pack_w(params['w2'], COUT))
    g1 = params['g1'].reshape(COUT, 1)
    b1 = params['b1'].reshape(COUT, 1)
    g2 = params['g2'].reshape(COUT, 1)
    b2 = params['b2'].reshape(COUT, 1)

    # Channel-major, lane-flat layouts (wrapper-side layout glue only).
    x_cn = jnp.transpose(x, (1, 0, 2, 3)).reshape(C1, N * H1W1)
    skip_cn = jnp.transpose(skip, (1, 0, 2, 3)).reshape(C2, NHW)

    kernel = functools.partial(_decoder_block_kernel, C1=C1, C2=C2, COUT=COUT,
                               CS=CS, W=W, NHW=NHW, PAD=PAD)

    # VMEM budget derived from the actual buffers (generous headroom for
    # (8,128) tile padding); recompute once tiling / double-buffering exists.
    n_elems = (x_cn.size + skip_cn.size + bd.size + masks.size + w1m.size +
               w2m.size + 4 * COUT + COUT * NHW +
               CS * (NHW + 2 * PAD) + 9 * CS * NHW)
    vmem_limit = int(min(max(8 * 4 * n_elems, 4 * 1024 * 1024),
                         64 * 1024 * 1024))

    out_flat = pl.pallas_call(
        kernel,
        out_shape=jax.ShapeDtypeStruct((COUT, NHW), jnp.float32),
        in_specs=[pl.BlockSpec(memory_space=pltpu.MemorySpace.VMEM)] * 10,
        out_specs=pl.BlockSpec(memory_space=pltpu.MemorySpace.VMEM),
        scratch_shapes=[
            # flat-padded activations + im2col slab, shared by both convs.
            pltpu.VMEM((CS, NHW + 2 * PAD), jnp.float32),
            pltpu.VMEM((9 * CS, NHW), jnp.float32),
        ],
        compiler_params=pltpu.CompilerParams(vmem_limit_bytes=vmem_limit),
    )(x_cn, skip_cn, jnp.asarray(bd), jnp.asarray(masks),
      w1m, g1, b1, w2m, g2, b2)

    # (COUT, N*HW) -> NCHW (contiguous wrapper-side reshape + transpose).
    return jnp.transpose(out_flat.reshape(COUT, N, H, W), (1, 0, 2, 3))


def _reference_forward(x, skip, params):
    """Pure-JAX reference (same math) used only for a sanity check."""
    N, C1, H1, W1 = x.shape
    _, C2, H2, W2 = skip.shape
    ah = jnp.asarray(_bilinear_matrix_align_corners(H1, H2))
    aw = jnp.asarray(_bilinear_matrix_align_corners(W1, W2))
    xw = jnp.einsum('nchw,vw->nchv', x, aw)
    xu = jnp.einsum('nckv,yk->ncyv', xw, ah)
    z = jnp.concatenate([xu, skip], axis=1)

    def conv_bn_relu(z, w, g, b):
        y = jax.lax.conv_general_dilated(
            z, w, (1, 1), 'SAME',
            dimension_numbers=('NCHW', 'HWIO', 'NCHW'))
        m = jnp.mean(y, axis=(0, 2, 3), keepdims=True)
        v = jnp.mean((y - m) ** 2, axis=(0, 2, 3), keepdims=True)
        y = (y - m) * jax.lax.rsqrt(v + _BN_EPS) * g.reshape(1, -1, 1, 1) \
            + b.reshape(1, -1, 1, 1)
        return jnp.maximum(y, 0.0)

    z = conv_bn_relu(z, params['w1'], params['g1'], params['b1'])
    z = conv_bn_relu(z, params['w2'], params['g2'], params['b2'])
    return z


if __name__ == "__main__":
    key = jax.random.PRNGKey(0)
    kx, ks, kp = jax.random.split(key, 3)

    # DecoderBlock(in_channels=4, out_channels=4, skip_channels=4):
    # x is the low-res feature map, skip the encoder skip connection.
    N, C_IN, H1, W1 = 2, 4, 8, 8
    C_SKIP, H2, W2 = 4, 16, 16
    C_OUT = 4

    x = jax.random.normal(kx, (N, C_IN, H1, W1), jnp.float32)
    skip = jax.random.normal(ks, (N, C_SKIP, H2, W2), jnp.float32)
    params = init_decoder_block_params(kp, C_IN, C_SKIP, C_OUT)

    out = jax.block_until_ready(decoder_block_forward(x, skip, params))
    assert out.shape == (N, C_OUT, H2, W2)

    ref = jax.block_until_ready(_reference_forward(x, skip, params))
    np.testing.assert_allclose(np.asarray(out), np.asarray(ref),
                               rtol=5e-3, atol=5e-3)

    print("KERNEL_OK")
</pallas_src>

<mosaic_0001>
module attributes {stable_mosaic.version = 11 : i64} {
  func.func @_decoder_block_kernel(%arg0: memref<4x128xf32, #tpu.memory_space<vmem>>, %arg1: memref<4x512xf32, #tpu.memory_space<vmem>>, %arg2: memref<128x512xf32, #tpu.memory_space<vmem>>, %arg3: memref<9x512xf32, #tpu.memory_space<vmem>>, %arg4: memref<4x72xf32, #tpu.memory_space<vmem>>, %arg5: memref<4x1xf32, #tpu.memory_space<vmem>>, %arg6: memref<4x1xf32, #tpu.memory_space<vmem>>, %arg7: memref<4x72xf32, #tpu.memory_space<vmem>>, %arg8: memref<4x1xf32, #tpu.memory_space<vmem>>, %arg9: memref<4x1xf32, #tpu.memory_space<vmem>>, %arg10: memref<4x512xf32, #tpu.memory_space<vmem>>, %arg11: memref<8x768xf32, #tpu.memory_space<vmem>>, %arg12: memref<72x512xf32, #tpu.memory_space<vmem>>) attributes {dimension_semantics = [], scalar_prefetch = 0 : i64, scratch_operands = 2 : i64, tpu.core_type = #tpu.core_type<tc>} {
    %cst = arith.constant 0.000000e+00 : f32
    %0 = vector.broadcast %cst : f32 to vector<8x128xf32>
    %c0 = arith.constant 0 : index
    %c0_0 = arith.constant 0 : index
    %1 = vector.load %arg11[%c0, %c0_0] : memref<8x768xf32, #tpu.memory_space<vmem>>, vector<8x128xf32>
    tpu.vector_store %arg11[%c0, %c0_0], %0 {strides = array<i32>} : memref<8x768xf32, #tpu.memory_space<vmem>>, vector<8x128xf32>,
    %c0_1 = arith.constant 0 : index
    %c640 = arith.constant 640 : index
    %2 = vector.load %arg11[%c0_1, %c640] : memref<8x768xf32, #tpu.memory_space<vmem>>, vector<8x128xf32>
    tpu.vector_store %arg11[%c0_1, %c640], %0 {strides = array<i32>} : memref<8x768xf32, #tpu.memory_space<vmem>>, vector<8x128xf32>,
    %c0_2 = arith.constant 0 : index
    %c0_3 = arith.constant 0 : index
    %3 = vector.load %arg0[%c0_2, %c0_3] : memref<4x128xf32, #tpu.memory_space<vmem>>, vector<4x128xf32>
    %c0_4 = arith.constant 0 : index
    %c0_5 = arith.constant 0 : index
    %4 = vector.load %arg2[%c0_4, %c0_5] : memref<128x512xf32, #tpu.memory_space<vmem>>, vector<128x512xf32>
    %cst_6 = arith.constant dense<0.000000e+00> : vector<4x512xf32>
    %5 = tpu.matmul %3, %4, %cst_6 {dimension_numbers = #tpu.dot_dimension_numbers<[1], [0], [0], [1], [0, 0, 1, 1], [], []>} : vector<4x128xf32>, vector<128x512xf32>, vector<4x512xf32> -> vector<4x512xf32>
    %c0_7 = arith.constant 0 : index
    %c128 = arith.constant 128 : index
    %6 = vector.load %arg11[%c0_7, %c128] : memref<8x768xf32, #tpu.memory_space<vmem>>, vector<4x512xf32>
    tpu.vector_store %arg11[%c0_7, %c128], %5 {strides = array<i32>} : memref<8x768xf32, #tpu.memory_space<vmem>>, vector<4x512xf32>,
    %c0_8 = arith.constant 0 : index
    %c0_9 = arith.constant 0 : index
    %7 = vector.load %arg1[%c0_8, %c0_9] : memref<4x512xf32, #tpu.memory_space<vmem>>, vector<4x512xf32>
    %c4 = arith.constant 4 : index
    %c128_10 = arith.constant 128 : index
    %8 = vector.load %arg11[%c4, %c128_10] : memref<8x768xf32, #tpu.memory_space<vmem>>, vector<4x512xf32>
    tpu.vector_store %arg11[%c4, %c128_10], %7 {strides = array<i32>} : memref<8x768xf32, #tpu.memory_space<vmem>>, vector<4x512xf32>,
    %c0_11 = arith.constant 0 : index
    %c111 = arith.constant 111 : index
    %9 = vector.load %arg11[%c0_11, %c111] : memref<8x768xf32, #tpu.memory_space<vmem>>, vector<8x512xf32>
    %c0_12 = arith.constant 0 : index
    %c0_13 = arith.constant 0 : index
    %10 = vector.load %arg3[%c0_12, %c0_13] : memref<9x512xf32, #tpu.memory_space<vmem>>, vector<1x512xf32>
    %11 = vector.broadcast %10 : vector<1x512xf32> to vector<8x512xf32>
    %12 = arith.mulf %9, %11 : vector<8x512xf32>
    %c0_14 = arith.constant 0 : index
    %c0_15 = arith.constant 0 : index
    %13 = vector.load %arg12[%c0_14, %c0_15] : memref<72x512xf32, #tpu.memory_space<vmem>>, vector<8x512xf32>
    tpu.vector_store %arg12[%c0_14, %c0_15], %12 {strides = array<i32>} : memref<72x512xf32, #tpu.memory_space<vmem>>, vector<8x512xf32>,
    %c0_16 = arith.constant 0 : index
    %c112 = arith.constant 112 : index
    %14 = vector.load %arg11[%c0_16, %c112] : memref<8x768xf32, #tpu.memory_space<vmem>>, vector<8x512xf32>
    %c1 = arith.constant 1 : index
    %c0_17 = arith.constant 0 : index
    %15 = vector.load %arg3[%c1, %c0_17] : memref<9x512xf32, #tpu.memory_space<vmem>>, vector<1x512xf32>
    %16 = vector.broadcast %15 : vector<1x512xf32> to vector<8x512xf32>
    %17 = arith.mulf %14, %16 : vector<8x512xf32>
    %c8 = arith.constant 8 : index
    %c0_18 = arith.constant 0 : index
    %18 = vector.load %arg12[%c8, %c0_18] : memref<72x512xf32, #tpu.memory_space<vmem>>, vector<8x512xf32>
    tpu.vector_store %arg12[%c8, %c0_18], %17 {strides = array<i32>} : memref<72x512xf32, #tpu.memory_space<vmem>>, vector<8x512xf32>,
    %c0_19 = arith.constant 0 : index
    %c113 = arith.constant 113 : index
    %19 = vector.load %arg11[%c0_19, %c113] : memref<8x768xf32, #tpu.memory_space<vmem>>, vector<8x512xf32>
    %c2 = arith.constant 2 : index
    %c0_20 = arith.constant 0 : index
    %20 = vector.load %arg3[%c2, %c0_20] : memref<9x512xf32, #tpu.memory_space<vmem>>, vector<1x512xf32>
    %21 = vector.broadcast %20 : vector<1x512xf32> to vector<8x512xf32>
    %22 = arith.mulf %19, %21 : vector<8x512xf32>
    %c16 = arith.constant 16 : index
    %c0_21 = arith.constant 0 : index
    %23 = vector.load %arg12[%c16, %c0_21] : memref<72x512xf32, #tpu.memory_space<vmem>>, vector<8x512xf32>
    tpu.vector_store %arg12[%c16, %c0_21], %22 {strides = array<i32>} : memref<72x512xf32, #tpu.memory_space<vmem>>, vector<8x512xf32>,
    %c0_22 = arith.constant 0 : index
    %c127 = arith.constant 127 : index
    %24 = vector.load %arg11[%c0_22, %c127] : memref<8x768xf32, #tpu.memory_space<vmem>>, vector<8x512xf32>
    %c3 = arith.constant 3 : index
    %c0_23 = arith.constant 0 : index
    %25 = vector.load %arg3[%c3, %c0_23] : memref<9x512xf32, #tpu.memory_space<vmem>>, vector<1x512xf32>
    %26 = vector.broadcast %25 : vector<1x512xf32> to vector<8x512xf32>
    %27 = arith.mulf %24, %26 : vector<8x512xf32>
    %c24 = arith.constant 24 : index
    %c0_24 = arith.constant 0 : index
    %28 = vector.load %arg12[%c24, %c0_24] : memref<72x512xf32, #tpu.memory_space<vmem>>, vector<8x512xf32>
    tpu.vector_store %arg12[%c24, %c0_24], %27 {strides = array<i32>} : memref<72x512xf32, #tpu.memory_space<vmem>>, vector<8x512xf32>,
    %c0_25 = arith.constant 0 : index
    %c128_26 = arith.constant 128 : index
    %29 = vector.load %arg11[%c0_25, %c128_26] : memref<8x768xf32, #tpu.memory_space<vmem>>, vector<8x512xf32>
    %c32 = arith.constant 32 : index
    %c0_27 = arith.constant 0 : index
    %30 = vector.load %arg12[%c32, %c0_27] : memref<72x512xf32, #tpu.memory_space<vmem>>, vector<8x512xf32>
    tpu.vector_store %arg12[%c32, %c0_27], %29 {strides = array<i32>} : memref<72x512xf32, #tpu.memory_space<vmem>>, vector<8x512xf32>,
    %c0_28 = arith.constant 0 : index
    %c129 = arith.constant 129 : index
    %31 = vector.load %arg11[%c0_28, %c129] : memref<8x768xf32, #tpu.memory_space<vmem>>, vector<8x512xf32>
    %c5 = arith.constant 5 : index
    %c0_29 = arith.constant 0 : index
    %32 = vector.load %arg3[%c5, %c0_29] : memref<9x512xf32, #tpu.memory_space<vmem>>, vector<1x512xf32>
    %33 = vector.broadcast %32 : vector<1x512xf32> to vector<8x512xf32>
    %34 = arith.mulf %31, %33 : vector<8x512xf32>
    %c40 = arith.constant 40 : index
    %c0_30 = arith.constant 0 : index
    %35 = vector.load %arg12[%c40, %c0_30] : memref<72x512xf32, #tpu.memory_space<vmem>>, vector<8x512xf32>
    tpu.vector_store %arg12[%c40, %c0_30], %34 {strides = array<i32>} : memref<72x512xf32, #tpu.memory_space<vmem>>, vector<8x512xf32>,
    %c0_31 = arith.constant 0 : index
    %c143 = arith.constant 143 : index
    %36 = vector.load %arg11[%c0_31, %c143] : memref<8x768xf32, #tpu.memory_space<vmem>>, vector<8x512xf32>
    %c6 = arith.constant 6 : index
    %c0_32 = arith.constant 0 : index
    %37 = vector.load %arg3[%c6, %c0_32] : memref<9x512xf32, #tpu.memory_space<vmem>>, vector<1x512xf32>
    %38 = vector.broadcast %37 : vector<1x512xf32> to vector<8x512xf32>
    %39 = arith.mulf %36, %38 : vector<8x512xf32>
    %c48 = arith.constant 48 : index
    %c0_33 = arith.constant 0 : index
    %40 = vector.load %arg12[%c48, %c0_33] : memref<72x512xf32, #tpu.memory_space<vmem>>, vector<8x512xf32>
    tpu.vector_store %arg12[%c48, %c0_33], %39 {strides = array<i32>} : memref<72x512xf32, #tpu.memory_space<vmem>>, vector<8x512xf32>,
    %c0_34 = arith.constant 0 : index
    %c144 = arith.constant 144 : index
    %41 = vector.load %arg11[%c0_34, %c144] : memref<8x768xf32, #tpu.memory_space<vmem>>, vector<8x512xf32>
    %c7 = arith.constant 7 : index
    %c0_35 = arith.constant 0 : index
    %42 = vector.load %arg3[%c7, %c0_35] : memref<9x512xf32, #tpu.memory_space<vmem>>, vector<1x512xf32>
    %43 = vector.broadcast %42 : vector<1x512xf32> to vector<8x512xf32>
    %44 = arith.mulf %41, %43 : vector<8x512xf32>
    %c56 = arith.constant 56 : index
    %c0_36 = arith.constant 0 : index
    %45 = vector.load %arg12[%c56, %c0_36] : memref<72x512xf32, #tpu.memory_space<vmem>>, vector<8x512xf32>
    tpu.vector_store %arg12[%c56, %c0_36], %44 {strides = array<i32>} : memref<72x512xf32, #tpu.memory_space<vmem>>, vector<8x512xf32>,
    %c0_37 = arith.constant 0 : index
    %c145 = arith.constant 145 : index
    %46 = vector.load %arg11[%c0_37, %c145] : memref<8x768xf32, #tpu.memory_space<vmem>>, vector<8x512xf32>
    %c8_38 = arith.constant 8 : index
    %c0_39 = arith.constant 0 : index
    %47 = vector.load %arg3[%c8_38, %c0_39] : memref<9x512xf32, #tpu.memory_space<vmem>>, vector<1x512xf32>
    %48 = vector.broadcast %47 : vector<1x512xf32> to vector<8x512xf32>
    %49 = arith.mulf %46, %48 : vector<8x512xf32>
    %c64 = arith.constant 64 : index
    %c0_40 = arith.constant 0 : index
    %50 = vector.load %arg12[%c64, %c0_40] : memref<72x512xf32, #tpu.memory_space<vmem>>, vector<8x512xf32>
    tpu.vector_store %arg12[%c64, %c0_40], %49 {strides = array<i32>} : memref<72x512xf32, #tpu.memory_space<vmem>>, vector<8x512xf32>,
    %c0_41 = arith.constant 0 : index
    %c0_42 = arith.constant 0 : index
    %51 = vector.load %arg4[%c0_41, %c0_42] : memref<4x72xf32, #tpu.memory_space<vmem>>, vector<4x72xf32>
    %c0_43 = arith.constant 0 : index
    %c0_44 = arith.constant 0 : index
    %52 = vector.load %arg12[%c0_43, %c0_44] : memref<72x512xf32, #tpu.memory_space<vmem>>, vector<72x512xf32>
    %cst_45 = arith.constant dense<0.000000e+00> : vector<4x512xf32>
    %53 = tpu.matmul %51, %52, %cst_45 {dimension_numbers = #tpu.dot_dimension_numbers<[1], [0], [0], [1], [0, 0, 1, 1], [], []>} : vector<4x72xf32>, vector<72x512xf32>, vector<4x512xf32> -> vector<4x512xf32>
    %cst_46 = arith.constant dense<0.000000e+00> : vector<4xf32>
    %54 = vector.multi_reduction <add>, %53, %cst_46 [1] : vector<4x512xf32> to vector<4xf32>
    %55 = vector.shape_cast %54 : vector<4xf32> to vector<4x1xf32>
    %cst_47 = arith.constant 5.120000e+02 : f32
    %56 = vector.broadcast %cst_47 : f32 to vector<4x1xf32>
    %57 = arith.divf %55, %56 : vector<4x1xf32>
    %58 = vector.broadcast %57 : vector<4x1xf32> to vector<4x512xf32>
    %59 = arith.subf %53, %58 : vector<4x512xf32>
    %60 = arith.mulf %59, %59 : vector<4x512xf32>
    %cst_48 = arith.constant dense<0.000000e+00> : vector<4xf32>
    %61 = vector.multi_reduction <add>, %60, %cst_48 [1] : vector<4x512xf32> to vector<4xf32>
    %62 = vector.shape_cast %61 : vector<4xf32> to vector<4x1xf32>
    %cst_49 = arith.constant 5.120000e+02 : f32
    %63 = vector.broadcast %cst_49 : f32 to vector<4x1xf32>
    %64 = arith.divf %62, %63 : vector<4x1xf32>
    %c0_50 = arith.constant 0 : index
    %c0_51 = arith.constant 0 : index
    %65 = vector.load %arg5[%c0_50, %c0_51] : memref<4x1xf32, #tpu.memory_space<vmem>>, vector<4x1xf32>
    %cst_52 = arith.constant 9.99999974E-6 : f32
    %66 = vector.broadcast %cst_52 : f32 to vector<4x1xf32>
    %67 = arith.addf %64, %66 : vector<4x1xf32>
    %68 = math.rsqrt %67 : vector<4x1xf32>
    %69 = arith.mulf %65, %68 : vector<4x1xf32>
    %70 = vector.broadcast %69 : vector<4x1xf32> to vector<4x512xf32>
    %71 = arith.mulf %59, %70 : vector<4x512xf32>
    %c0_53 = arith.constant 0 : index
    %c0_54 = arith.constant 0 : index
    %72 = vector.load %arg6[%c0_53, %c0_54] : memref<4x1xf32, #tpu.memory_space<vmem>>, vector<4x1xf32>
    %73 = vector.broadcast %72 : vector<4x1xf32> to vector<4x512xf32>
    %74 = arith.addf %71, %73 : vector<4x512xf32>
    %cst_55 = arith.constant 0.000000e+00 : f32
    %75 = vector.broadcast %cst_55 : f32 to vector<4x512xf32>
    %76 = arith.maximumf %74, %75 : vector<4x512xf32>
    %c0_56 = arith.constant 0 : index
    %c128_57 = arith.constant 128 : index
    %77 = vector.load %arg11[%c0_56, %c128_57] : memref<8x768xf32, #tpu.memory_space<vmem>>, vector<4x512xf32>
    tpu.vector_store %arg11[%c0_56, %c128_57], %76 {strides = array<i32>} : memref<8x768xf32, #tpu.memory_space<vmem>>, vector<4x512xf32>,
    %c0_58 = arith.constant 0 : index
    %c111_59 = arith.constant 111 : index
    %78 = vector.load %arg11[%c0_58, %c111_59] : memref<8x768xf32, #tpu.memory_space<vmem>>, vector<4x512xf32>
    %c0_60 = arith.constant 0 : index
    %c0_61 = arith.constant 0 : index
    %79 = vector.load %arg3[%c0_60, %c0_61] : memref<9x512xf32, #tpu.memory_space<vmem>>, vector<1x512xf32>
    %80 = vector.broadcast %79 : vector<1x512xf32> to vector<4x512xf32>
    %81 = arith.mulf %78, %80 : vector<4x512xf32>
    %c0_62 = arith.constant 0 : index
    %c0_63 = arith.constant 0 : index
    %82 = vector.load %arg12[%c0_62, %c0_63] : memref<72x512xf32, #tpu.memory_space<vmem>>, vector<4x512xf32>
    tpu.vector_store %arg12[%c0_62, %c0_63], %81 {strides = array<i32>} : memref<72x512xf32, #tpu.memory_space<vmem>>, vector<4x512xf32>,
    %c0_64 = arith.constant 0 : index
    %c112_65 = arith.constant 112 : index
    %83 = vector.load %arg11[%c0_64, %c112_65] : memref<8x768xf32, #tpu.memory_space<vmem>>, vector<4x512xf32>
    %c1_66 = arith.constant 1 : index
    %c0_67 = arith.constant 0 : index
    %84 = vector.load %arg3[%c1_66, %c0_67] : memref<9x512xf32, #tpu.memory_space<vmem>>, vector<1x512xf32>
    %85 = vector.broadcast %84 : vector<1x512xf32> to vector<4x512xf32>
    %86 = arith.mulf %83, %85 : vector<4x512xf32>
    %c8_68 = arith.constant 8 : index
    %c0_69 = arith.constant 0 : index
    %87 = vector.load %arg12[%c8_68, %c0_69] : memref<72x512xf32, #tpu.memory_space<vmem>>, vector<4x512xf32>
    tpu.vector_store %arg12[%c8_68, %c0_69], %86 {strides = array<i32>} : memref<72x512xf32, #tpu.memory_space<vmem>>, vector<4x512xf32>,
    %c0_70 = arith.constant 0 : index
    %c113_71 = arith.constant 113 : index
    %88 = vector.load %arg11[%c0_70, %c113_71] : memref<8x768xf32, #tpu.memory_space<vmem>>, vector<4x512xf32>
    %c2_72 = arith.constant 2 : index
    %c0_73 = arith.constant 0 : index
    %89 = vector.load %arg3[%c2_72, %c0_73] : memref<9x512xf32, #tpu.memory_space<vmem>>, vector<1x512xf32>
    %90 = vector.broadcast %89 : vector<1x512xf32> to vector<4x512xf32>
    %91 = arith.mulf %88, %90 : vector<4x512xf32>
    %c16_74 = arith.constant 16 : index
    %c0_75 = arith.constant 0 : index
    %92 = vector.load %arg12[%c16_74, %c0_75] : memref<72x512xf32, #tpu.memory_space<vmem>>, vector<4x512xf32>
    tpu.vector_store %arg12[%c16_74, %c0_75], %91 {strides = array<i32>} : memref<72x512xf32, #tpu.memory_space<vmem>>, vector<4x512xf32>,
    %c0_76 = arith.constant 0 : index
    %c127_77 = arith.constant 127 : index
    %93 = vector.load %arg11[%c0_76, %c127_77] : memref<8x768xf32, #tpu.memory_space<vmem>>, vector<4x512xf32>
    %c3_78 = arith.constant 3 : index
    %c0_79 = arith.constant 0 : index
    %94 = vector.load %arg3[%c3_78, %c0_79] : memref<9x512xf32, #tpu.memory_space<vmem>>, vector<1x512xf32>
    %95 = vector.broadcast %94 : vector<1x512xf32> to vector<4x512xf32>
    %96 = arith.mulf %93, %95 : vector<4x512xf32>
    %c24_80 = arith.constant 24 : index
    %c0_81 = arith.constant 0 : index
    %97 = vector.load %arg12[%c24_80, %c0_81] : memref<72x512xf32, #tpu.memory_space<vmem>>, vector<4x512xf32>
    tpu.vector_store %arg12[%c24_80, %c0_81], %96 {strides = array<i32>} : memref<72x512xf32, #tpu.memory_space<vmem>>, vector<4x512xf32>,
    %c0_82 = arith.constant 0 : index
    %c128_83 = arith.constant 128 : index
    %98 = vector.load %arg11[%c0_82, %c128_83] : memref<8x768xf32, #tpu.memory_space<vmem>>, vector<4x512xf32>
    %c32_84 = arith.constant 32 : index
    %c0_85 = arith.constant 0 : index
    %99 = vector.load %arg12[%c32_84, %c0_85] : memref<72x512xf32, #tpu.memory_space<vmem>>, vector<4x512xf32>
    tpu.vector_store %arg12[%c32_84, %c0_85], %98 {strides = array<i32>} : memref<72x512xf32, #tpu.memory_space<vmem>>, vector<4x512xf32>,
    %c0_86 = arith.constant 0 : index
    %c129_87 = arith.constant 129 : index
    %100 = vector.load %arg11[%c0_86, %c129_87] : memref<8x768xf32, #tpu.memory_space<vmem>>, vector<4x512xf32>
    %c5_88 = arith.constant 5 : index
    %c0_89 = arith.constant 0 : index
    %101 = vector.load %arg3[%c5_88, %c0_89] : memref<9x512xf32, #tpu.memory_space<vmem>>, vector<1x512xf32>
    %102 = vector.broadcast %101 : vector<1x512xf32> to vector<4x512xf32>
    %103 = arith.mulf %100, %102 : vector<4x512xf32>
    %c40_90 = arith.constant 40 : index
    %c0_91 = arith.constant 0 : index
    %104 = vector.load %arg12[%c40_90, %c0_91] : memref<72x512xf32, #tpu.memory_space<vmem>>, vector<4x512xf32>
    tpu.vector_store %arg12[%c40_90, %c0_91], %103 {strides = array<i32>} : memref<72x512xf32, #tpu.memory_space<vmem>>, vector<4x512xf32>,
    %c0_92 = arith.constant 0 : index
    %c143_93 = arith.constant 143 : index
    %105 = vector.load %arg11[%c0_92, %c143_93] : memref<8x768xf32, #tpu.memory_space<vmem>>, vector<4x512xf32>
    %c6_94 = arith.constant 6 : index
    %c0_95 = arith.constant 0 : index
    %106 = vector.load %arg3[%c6_94, %c0_95] : memref<9x512xf32, #tpu.memory_space<vmem>>, vector<1x512xf32>
    %107 = vector.broadcast %106 : vector<1x512xf32> to vector<4x512xf32>
    %108 = arith.mulf %105, %107 : vector<4x512xf32>
    %c48_96 = arith.constant 48 : index
    %c0_97 = arith.constant 0 : index
    %109 = vector.load %arg12[%c48_96, %c0_97] : memref<72x512xf32, #tpu.memory_space<vmem>>, vector<4x512xf32>
    tpu.vector_store %arg12[%c48_96, %c0_97], %108 {strides = array<i32>} : memref<72x512xf32, #tpu.memory_space<vmem>>, vector<4x512xf32>,
    %c0_98 = arith.constant 0 : index
    %c144_99 = arith.constant 144 : index
    %110 = vector.load %arg11[%c0_98, %c144_99] : memref<8x768xf32, #tpu.memory_space<vmem>>, vector<4x512xf32>
    %c7_100 = arith.constant 7 : index
    %c0_101 = arith.constant 0 : index
    %111 = vector.load %arg3[%c7_100, %c0_101] : memref<9x512xf32, #tpu.memory_space<vmem>>, vector<1x512xf32>
    %112 = vector.broadcast %111 : vector<1x512xf32> to vector<4x512xf32>
    %113 = arith.mulf %110, %112 : vector<4x512xf32>
    %c56_102 = arith.constant 56 : index
    %c0_103 = arith.constant 0 : index
    %114 = vector.load %arg12[%c56_102, %c0_103] : memref<72x512xf32, #tpu.memory_space<vmem>>, vector<4x512xf32>
    tpu.vector_store %arg12[%c56_102, %c0_103], %113 {strides = array<i32>} : memref<72x512xf32, #tpu.memory_space<vmem>>, vector<4x512xf32>,
    %c0_104 = arith.constant 0 : index
    %c145_105 = arith.constant 145 : index
    %115 = vector.load %arg11[%c0_104, %c145_105] : memref<8x768xf32, #tpu.memory_space<vmem>>, vector<4x512xf32>
    %c8_106 = arith.constant 8 : index
    %c0_107 = arith.constant 0 : index
    %116 = vector.load %arg3[%c8_106, %c0_107] : memref<9x512xf32, #tpu.memory_space<vmem>>, vector<1x512xf32>
    %117 = vector.broadcast %116 : vector<1x512xf32> to vector<4x512xf32>
    %118 = arith.mulf %115, %117 : vector<4x512xf32>
    %c64_108 = arith.constant 64 : index
    %c0_109 = arith.constant 0 : index
    %119 = vector.load %arg12[%c64_108, %c0_109] : memref<72x512xf32, #tpu.memory_space<vmem>>, vector<4x512xf32>
    tpu.vector_store %arg12[%c64_108, %c0_109], %118 {strides = array<i32>} : memref<72x512xf32, #tpu.memory_space<vmem>>, vector<4x512xf32>,
    %c0_110 = arith.constant 0 : index
    %c0_111 = arith.constant 0 : index
    %120 = vector.load %arg7[%c0_110, %c0_111] : memref<4x72xf32, #tpu.memory_space<vmem>>, vector<4x72xf32>
    %c0_112 = arith.constant 0 : index
    %c0_113 = arith.constant 0 : index
    %121 = vector.load %arg12[%c0_112, %c0_113] : memref<72x512xf32, #tpu.memory_space<vmem>>, vector<72x512xf32>
    %cst_114 = arith.constant dense<0.000000e+00> : vector<4x512xf32>
    %122 = tpu.matmul %120, %121, %cst_114 {dimension_numbers = #tpu.dot_dimension_numbers<[1], [0], [0], [1], [0, 0, 1, 1], [], []>} : vector<4x72xf32>, vector<72x512xf32>, vector<4x512xf32> -> vector<4x512xf32>
    %cst_115 = arith.constant dense<0.000000e+00> : vector<4xf32>
    %123 = vector.multi_reduction <add>, %122, %cst_115 [1] : vector<4x512xf32> to vector<4xf32>
    %124 = vector.shape_cast %123 : vector<4xf32> to vector<4x1xf32>
    %cst_116 = arith.constant 5.120000e+02 : f32
    %125 = vector.broadcast %cst_116 : f32 to vector<4x1xf32>
    %126 = arith.divf %124, %125 : vector<4x1xf32>
    %127 = vector.broadcast %126 : vector<4x1xf32> to vector<4x512xf32>
    %128 = arith.subf %122, %127 : vector<4x512xf32>
    %129 = arith.mulf %128, %128 : vector<4x512xf32>
    %cst_117 = arith.constant dense<0.000000e+00> : vector<4xf32>
    %130 = vector.multi_reduction <add>, %129, %cst_117 [1] : vector<4x512xf32> to vector<4xf32>
    %131 = vector.shape_cast %130 : vector<4xf32> to vector<4x1xf32>
    %cst_118 = arith.constant 5.120000e+02 : f32
    %132 = vector.broadcast %cst_118 : f32 to vector<4x1xf32>
    %133 = arith.divf %131, %132 : vector<4x1xf32>
    %c0_119 = arith.constant 0 : index
    %c0_120 = arith.constant 0 : index
    %134 = vector.load %arg8[%c0_119, %c0_120] : memref<4x1xf32, #tpu.memory_space<vmem>>, vector<4x1xf32>
    %cst_121 = arith.constant 9.99999974E-6 : f32
    %135 = vector.broadcast %cst_121 : f32 to vector<4x1xf32>
    %136 = arith.addf %133, %135 : vector<4x1xf32>
    %137 = math.rsqrt %136 : vector<4x1xf32>
    %138 = arith.mulf %134, %137 : vector<4x1xf32>
    %139 = vector.broadcast %138 : vector<4x1xf32> to vector<4x512xf32>
    %140 = arith.mulf %128, %139 : vector<4x512xf32>
    %c0_122 = arith.constant 0 : index
    %c0_123 = arith.constant 0 : index
    %141 = vector.load %arg9[%c0_122, %c0_123] : memref<4x1xf32, #tpu.memory_space<vmem>>, vector<4x1xf32>
    %142 = vector.broadcast %141 : vector<4x1xf32> to vector<4x512xf32>
    %143 = arith.addf %140, %142 : vector<4x512xf32>
    %cst_124 = arith.constant 0.000000e+00 : f32
    %144 = vector.broadcast %cst_124 : f32 to vector<4x512xf32>
    %145 = arith.maximumf %143, %144 : vector<4x512xf32>
    %c0_125 = arith.constant 0 : index
    %c0_126 = arith.constant 0 : index
    %146 = vector.load %arg10[%c0_125, %c0_126] : memref<4x512xf32, #tpu.memory_space<vmem>>, vector<4x512xf32>
    tpu.vector_store %arg10[%c0_125, %c0_126], %145 {strides = array<i32>} : memref<4x512xf32, #tpu.memory_space<vmem>>, vector<4x512xf32>,
    return
  }
}

</mosaic_0001>

<llo_original>
// kernel: tpu_custom_call.1
$region0: #{tpu_custom_call.1}
  #allocation0 [shape = 'u32[]', space=smem, size = 0x4, offset = 0x4, fixed_abs, tag = 'smem constant byte address 0x4 - core index']
  #allocation1 [shape = 'u32[72,128]{1,0:T(1,128)}', space=vmem, size = 0x9000, scoped, tag = 'internal scratch']
  #allocation2 [shape = 'f32[8,768]{1,0:T(8,128)}', space=vmem, size = 0x6000, scoped, tag = 'scratch operand']
  #allocation3 [shape = 'f32[72,512]{1,0:T(8,128)}', space=vmem, size = 0x24000, scoped, tag = 'scratch operand']
  %s0 = inlined_call_operand.vmem [shape: f32[4,128], index: 0, kind: input, shape index: {}]
  %s1 = inlined_call_operand.hbm [shape: f32[4,512], index: 1, kind: input, shape index: {}]
  %s2 = inlined_call_operand.hbm [shape: f32[128,512], index: 2, kind: input, shape index: {}]
  %s3 = inlined_call_operand.hbm [shape: f32[9,512], index: 3, kind: input, shape index: {}]
  %s4 = inlined_call_operand.vmem [shape: f32[4,72], index: 4, kind: input, shape index: {}]
  %s5 = inlined_call_operand.vmem [shape: f32[4,1], index: 5, kind: input, shape index: {}]
  %s6 = inlined_call_operand.vmem [shape: f32[4,1], index: 6, kind: input, shape index: {}]
  %s7 = inlined_call_operand.vmem [shape: f32[4,72], index: 7, kind: input, shape index: {}]
  %s8 = inlined_call_operand.vmem [shape: f32[4,1], index: 8, kind: input, shape index: {}]
  %s9 = inlined_call_operand.vmem [shape: f32[4,1], index: 9, kind: input, shape index: {}]
  %s10 = inlined_call_operand.hbm [shape: f32[4,512], index: 10, kind: output, shape index: {}]
  %s11 = sld [smem:[#allocation0]]
  $region62: #{tpu_custom_call.1} parent=0
    _
  %s13 = ssub.s32 1, %s11
  %s14 = scalar_select 0, %s13, %s11
  $region1: #{tpu_custom_call.1} parent=0
    #allocation4 [shape = 'u8[8192]{0}', space=vmem, size = 0x2000, scoped, tag = 'input window, operand 1, single buffered']
    #allocation5 [shape = 's32[1]{0}', space=sflag, size = 0x4, scoped, tag = 'scoped memory for tpu_custom_call.1']
    #allocation6 [shape = 's32[1]{0}', space=sflag, size = 0x4, scoped, tag = 'scoped memory for tpu_custom_call.1']
    #allocation7 [shape = 'u8[262144]{0}', space=vmem, size = 0x40000, scoped, tag = 'input window, operand 2, single buffered']
    #allocation8 [shape = 's32[1]{0}', space=sflag, size = 0x4, scoped, tag = 'scoped memory for tpu_custom_call.1']
    #allocation9 [shape = 'u8[32768]{0}', space=vmem, size = 0x8000, scoped, tag = 'input window, operand 3, single buffered']
    #allocation10 [shape = 'u8[8192]{0}', space=vmem, size = 0x2000, scoped, tag = 'output window, operand 0, single buffered']
    %15 = vsyncpa [#allocation5], 0
    %16 = vsyncpa [#allocation8], 0
    %17 = vsyncpa [#allocation6], 0
    // Predicated region
    $region2: #{tpu_custom_call.1} parent=1 // pred_check
      _
    $region3: #{tpu_custom_call.1} parent=1 // pred_check_branch
      %19 = sbr.rel (0) target = $region5
    $region4: #{tpu_custom_call.1} parent=1 // pred_region
      _
    $region5: #{tpu_custom_call.1} parent=1 // pred_fallthru
      _
    // Predicated region
    $region6: #{tpu_custom_call.1} parent=1 // pred_check
      _
    $region7: #{tpu_custom_call.1} parent=1 // pred_check_branch
      %21 = sbr.rel (0) target = $region9
    $region8: #{tpu_custom_call.1} parent=1 // pred_region
      %23 = vsyncadd [#allocation5], 0
      %s25 = sshll.u32 %s1, 4
      %s26 = int_to_ptr.hbm [resolvable:$true] %s25
      %s27 = sshll.u32 [#allocation4], 4
      %s28 = int_to_ptr.vmem [resolvable:$true] %s27
      %30 = dma.hbm_to_vmem [thread:$0]  %s26, 256, %s28, [#allocation5]
    $region9: #{tpu_custom_call.1} parent=1 // pred_fallthru
      _
    // Predicated region
    $region10: #{tpu_custom_call.1} parent=1 // pred_check
      _
    $region11: #{tpu_custom_call.1} parent=1 // pred_check_branch
      %32 = sbr.rel (0) target = $region13
    $region12: #{tpu_custom_call.1} parent=1 // pred_region
      %34 = vsyncadd [#allocation8], 0
      %s35 = sshll.u32 %s2, 4
      %s36 = int_to_ptr.hbm [resolvable:$true] %s35
      %s37 = sshll.u32 [#allocation7], 4
      %s38 = int_to_ptr.vmem [resolvable:$true] %s37
      %43 = dma.hbm_to_vmem [thread:$0]  %s36, 8192, %s38, [#allocation8], 512, 512, 32
    $region13: #{tpu_custom_call.1} parent=1 // pred_fallthru
      _
    // Predicated region
    $region14: #{tpu_custom_call.1} parent=1 // pred_check
      _
    $region15: #{tpu_custom_call.1} parent=1 // pred_check_branch
      %45 = sbr.rel (0) target = $region17
    $region16: #{tpu_custom_call.1} parent=1 // pred_region
      %47 = vsyncadd [#allocation8], 0
      %s48 = sshll.u32 %s3, 4
      %s49 = int_to_ptr.hbm [resolvable:$true] %s48
      %s50 = sshll.u32 [#allocation9], 4
      %s51 = int_to_ptr.vmem [resolvable:$true] %s50
      %56 = dma.hbm_to_vmem [thread:$0]  %s49, 1024, %s51, [#allocation8], 512, 512, 32
    $region17: #{tpu_custom_call.1} parent=1 // pred_fallthru
      _
    // Predicated region
    $region18: #{tpu_custom_call.1} parent=1 // pred_check
      _
    $region19: #{tpu_custom_call.1} parent=1 // pred_check_branch
      %58 = sbr.rel (0) target = $region21
    $region20: #{tpu_custom_call.1} parent=1 // pred_region
      _
    $region21: #{tpu_custom_call.1} parent=1 // pred_fallthru
      _
    // Predicated region
    $region22: #{tpu_custom_call.1} parent=1 // pred_check
      _
    $region23: #{tpu_custom_call.1} parent=1 // pred_check_branch
      %60 = sbr.rel (0) target = $region25
    $region24: #{tpu_custom_call.1} parent=1 // pred_region
      _
    $region25: #{tpu_custom_call.1} parent=1 // pred_fallthru
      _
    // Predicated region
    $region26: #{tpu_custom_call.1} parent=1 // pred_check
      _
    $region27: #{tpu_custom_call.1} parent=1 // pred_check_branch
      %62 = sbr.rel (0) target = $region29
    $region28: #{tpu_custom_call.1} parent=1 // pred_region
      _
    $region29: #{tpu_custom_call.1} parent=1 // pred_fallthru
      _
    // Predicated region
    $region30: #{tpu_custom_call.1} parent=1 // pred_check
      _
    $region31: #{tpu_custom_call.1} parent=1 // pred_check_branch
      %64 = sbr.rel (0) target = $region33
    $region32: #{tpu_custom_call.1} parent=1 // pred_region
      _
    $region33: #{tpu_custom_call.1} parent=1 // pred_fallthru
      _
    // Predicated region
    $region34: #{tpu_custom_call.1} parent=1 // pred_check
      _
    $region35: #{tpu_custom_call.1} parent=1 // pred_check_branch
      %66 = sbr.rel (0) target = $region37
    $region36: #{tpu_custom_call.1} parent=1 // pred_region
      _
    $region37: #{tpu_custom_call.1} parent=1 // pred_fallthru
      _
    // Predicated region
    $region38: #{tpu_custom_call.1} parent=1 // pred_check
      _
    $region39: #{tpu_custom_call.1} parent=1 // pred_check_branch
      %68 = sbr.rel (0) target = $region41
    $region40: #{tpu_custom_call.1} parent=1 // pred_region
      _
    $region41: #{tpu_custom_call.1} parent=1 // pred_fallthru
      _
    // Predicated region
    $region42: #{tpu_custom_call.1} parent=1 // pred_check
      _
    $region43: #{tpu_custom_call.1} parent=1 // pred_check_branch
      %70 = sbr.rel (0) target = $region45
    $region44: #{tpu_custom_call.1} parent=1 // pred_region
      %72 = dma.done [#allocation5], 256
    $region45: #{tpu_custom_call.1} parent=1 // pred_fallthru
      _
    // Predicated region
    $region46: #{tpu_custom_call.1} parent=1 // pred_check
      _
    $region47: #{tpu_custom_call.1} parent=1 // pred_check_branch
      %74 = sbr.rel (0) target = $region49
    $region48: #{tpu_custom_call.1} parent=1 // pred_region
      %76 = dma.done [#allocation8], 8192
    $region49: #{tpu_custom_call.1} parent=1 // pred_fallthru
      _
    // Predicated region
    $region50: #{tpu_custom_call.1} parent=1 // pred_check
      _
    $region51: #{tpu_custom_call.1} parent=1 // pred_check_branch
      %78 = sbr.rel (0) target = $region53
    $region52: #{tpu_custom_call.1} parent=1 // pred_region
      %80 = dma.done [#allocation8], 1024
    $region53: #{tpu_custom_call.1} parent=1 // pred_fallthru
      _
    %81 = vst [vmem:[#allocation2] sm:$0xff] 0.0
    %82 = vst [vmem:[#allocation2 + $0x28] sm:$0xff] 0.0
    %v83 = vld [vmem:[%s0] sm:$0xf]
    %v84 = vld [vmem:[#allocation7] sm:$0xff]
    %v85 = vld [vmem:[#allocation7 + $0x8] sm:$0xff]
    %v86 = vld [vmem:[#allocation7 + $0x10] sm:$0xff]
    %v87 = vld [vmem:[#allocation7 + $0x18] sm:$0xff]
    %v88 = vld [vmem:[#allocation7 + $0x20] sm:$0xff]
    %v89 = vld [vmem:[#allocation7 + $0x28] sm:$0xff]
    %v90 = vld [vmem:[#allocation7 + $0x30] sm:$0xff]
    %v91 = vld [vmem:[#allocation7 + $0x38] sm:$0xff]
    %v92 = vld [vmem:[#allocation7 + $0x40] sm:$0xff]
    %v93 = vld [vmem:[#allocation7 + $0x48] sm:$0xff]
    %v94 = vld [vmem:[#allocation7 + $0x50] sm:$0xff]
    %v95 = vld [vmem:[#allocation7 + $0x58] sm:$0xff]
    %v96 = vld [vmem:[#allocation7 + $0x60] sm:$0xff]
    %v97 = vld [vmem:[#allocation7 + $0x68] sm:$0xff]
    %v98 = vld [vmem:[#allocation7 + $0x70] sm:$0xff]
    %v99 = vld [vmem:[#allocation7 + $0x78] sm:$0xff]
    %v100 = vld [vmem:[#allocation7 + $0x80] sm:$0xff]
    %v101 = vld [vmem:[#allocation7 + $0x88] sm:$0xff]
    %v102 = vld [vmem:[#allocation7 + $0x90] sm:$0xff]
    %v103 = vld [vmem:[#allocation7 + $0x98] sm:$0xff]
    %v104 = vld [vmem:[#allocation7 + $0xa0] sm:$0xff]
    %v105 = vld [vmem:[#allocation7 + $0xa8] sm:$0xff]
    %v106 = vld [vmem:[#allocation7 + $0xb0] sm:$0xff]
    %v107 = vld [vmem:[#allocation7 + $0xb8] sm:$0xff]
    %v108 = vld [vmem:[#allocation7 + $0xc0] sm:$0xff]
    %v109 = vld [vmem:[#allocation7 + $0xc8] sm:$0xff]
    %v110 = vld [vmem:[#allocation7 + $0xd0] sm:$0xff]
    %v111 = vld [vmem:[#allocation7 + $0xd8] sm:$0xff]
    %v112 = vld [vmem:[#allocation7 + $0xe0] sm:$0xff]
    %v113 = vld [vmem:[#allocation7 + $0xe8] sm:$0xff]
    %v114 = vld [vmem:[#allocation7 + $0xf0] sm:$0xff]
    %v115 = vld [vmem:[#allocation7 + $0xf8] sm:$0xff]
    %v116 = vld [vmem:[#allocation7 + $0x100] sm:$0xff]
    %v117 = vld [vmem:[#allocation7 + $0x108] sm:$0xff]
    %v118 = vld [vmem:[#allocation7 + $0x110] sm:$0xff]
    %v119 = vld [vmem:[#allocation7 + $0x118] sm:$0xff]
    %v120 = vld [vmem:[#allocation7 + $0x120] sm:$0xff]
    %v121 = vld [vmem:[#allocation7 + $0x128] sm:$0xff]
    %v122 = vld [vmem:[#allocation7 + $0x130] sm:$0xff]
    %v123 = vld [vmem:[#allocation7 + $0x138] sm:$0xff]
    %v124 = vld [vmem:[#allocation7 + $0x140] sm:$0xff]
    %v125 = vld [vmem:[#allocation7 + $0x148] sm:$0xff]
    %v126 = vld [vmem:[#allocation7 + $0x150] sm:$0xff]
    %v127 = vld [vmem:[#allocation7 + $0x158] sm:$0xff]
    %v128 = vld [vmem:[#allocation7 + $0x160] sm:$0xff]
    %v129 = vld [vmem:[#allocation7 + $0x168] sm:$0xff]
    %v130 = vld [vmem:[#allocation7 + $0x170] sm:$0xff]
    %v131 = vld [vmem:[#allocation7 + $0x178] sm:$0xff]
    %v132 = vld [vmem:[#allocation7 + $0x180] sm:$0xff]
    %v133 = vld [vmem:[#allocation7 + $0x188] sm:$0xff]
    %v134 = vld [vmem:[#allocation7 + $0x190] sm:$0xff]
    %v135 = vld [vmem:[#allocation7 + $0x198] sm:$0xff]
    %v136 = vld [vmem:[#allocation7 + $0x1a0] sm:$0xff]
    %v137 = vld [vmem:[#allocation7 + $0x1a8] sm:$0xff]
    %v138 = vld [vmem:[#allocation7 + $0x1b0] sm:$0xff]
    %v139 = vld [vmem:[#allocation7 + $0x1b8] sm:$0xff]
    %v140 = vld [vmem:[#allocation7 + $0x1c0] sm:$0xff]
    %v141 = vld [vmem:[#allocation7 + $0x1c8] sm:$0xff]
    %v142 = vld [vmem:[#allocation7 + $0x1d0] sm:$0xff]
    %v143 = vld [vmem:[#allocation7 + $0x1d8] sm:$0xff]
    %v144 = vld [vmem:[#allocation7 + $0x1e0] sm:$0xff]
    %v145 = vld [vmem:[#allocation7 + $0x1e8] sm:$0xff]
    %v146 = vld [vmem:[#allocation7 + $0x1f0] sm:$0xff]
    %v147 = vld [vmem:[#allocation7 + $0x1f8] sm:$0xff]
    %148 = vmatpush.msra.mxu0 %v144
    %149 = vmatpush.msra.mxu0 %v140
    %150 = vmatpush.msra.mxu0 %v136
    %151 = vmatpush.msra.mxu0 %v132
    %152 = vmatpush.msra.mxu0 %v128
    %153 = vmatpush.msra.mxu0 %v124
    %154 = vmatpush.msra.mxu0 %v120
    %155 = vmatpush.msra.mxu0 %v116
    %156 = vmatpush.msra.mxu0 %v112
    %157 = vmatpush.msra.mxu0 %v108
    %158 = vmatpush.msra.mxu0 %v104
    %159 = vmatpush.msra.mxu0 %v100
    %160 = vmatpush.msra.mxu0 %v96
    %161 = vmatpush.msra.mxu0 %v92
    %162 = vmatpush.msra.mxu0 %v88
    %163 = vmatpush.msra.mxu0 %v84
    %164 = vmatmul.f32.gmra.mxu0 %v83
    %v165 = vpop.f32.mrf.mxu0
    %v166 = vadd.f32 0.0, %v165
    %167 = vdwg.mxu0
    %168 = vmatpush.msra.mxu0 %v145
    %169 = vmatpush.msra.mxu0 %v141
    %170 = vmatpush.msra.mxu0 %v137
    %171 = vmatpush.msra.mxu0 %v133
    %172 = vmatpush.msra.mxu0 %v129
    %173 = vmatpush.msra.mxu0 %v125
    %174 = vmatpush.msra.mxu0 %v121
    %175 = vmatpush.msra.mxu0 %v117
    %176 = vmatpush.msra.mxu0 %v113
    %177 = vmatpush.msra.mxu0 %v109
    %178 = vmatpush.msra.mxu0 %v105
    %179 = vmatpush.msra.mxu0 %v101
    %180 = vmatpush.msra.mxu0 %v97
    %181 = vmatpush.msra.mxu0 %v93
    %182 = vmatpush.msra.mxu0 %v89
    %183 = vmatpush.msra.mxu0 %v85
    %184 = vmatmul.f32.gmra.mxu0 %v83
    %v185 = vpop.f32.mrf.mxu0
    %v186 = vadd.f32 0.0, %v185
    %187 = vdwg.mxu0
    %188 = vmatpush.msra.mxu0 %v146
    %189 = vmatpush.msra.mxu0 %v142
    %190 = vmatpush.msra.mxu0 %v138
    %191 = vmatpush.msra.mxu0 %v134
    %192 = vmatpush.msra.mxu0 %v130
    %193 = vmatpush.msra.mxu0 %v126
    %194 = vmatpush.msra.mxu0 %v122
    %195 = vmatpush.msra.mxu0 %v118
    %196 = vmatpush.msra.mxu0 %v114
    %197 = vmatpush.msra.mxu0 %v110
    %198 = vmatpush.msra.mxu0 %v106
    %199 = vmatpush.msra.mxu0 %v102
    %200 = vmatpush.msra.mxu0 %v98
    %201 = vmatpush.msra.mxu0 %v94
    %202 = vmatpush.msra.mxu0 %v90
    %203 = vmatpush.msra.mxu0 %v86
    %204 = vmatmul.f32.gmra.mxu0 %v83
    %v205 = vpop.f32.mrf.mxu0
    %v206 = vadd.f32 0.0, %v205
    %207 = vdwg.mxu0
    %208 = vmatpush.msra.mxu0 %v147
    %209 = vmatpush.msra.mxu0 %v143
    %210 = vmatpush.msra.mxu0 %v139
    %211 = vmatpush.msra.mxu0 %v135
    %212 = vmatpush.msra.mxu0 %v131
    %213 = vmatpush.msra.mxu0 %v127
    %214 = vmatpush.msra.mxu0 %v123
    %215 = vmatpush.msra.mxu0 %v119
    %216 = vmatpush.msra.mxu0 %v115
    %217 = vmatpush.msra.mxu0 %v111
    %218 = vmatpush.msra.mxu0 %v107
    %219 = vmatpush.msra.mxu0 %v103
    %220 = vmatpush.msra.mxu0 %v99
    %221 = vmatpush.msra.mxu0 %v95
    %222 = vmatpush.msra.mxu0 %v91
    %223 = vmatpush.msra.mxu0 %v87
    %224 = vmatmul.f32.gmra.mxu0 %v83
    %v225 = vpop.f32.mrf.mxu0
    %v226 = vadd.f32 0.0, %v225
    %227 = vdwg.mxu0
    %228 = vst [vmem:[#allocation2 + $0x8] sm:$0xf] %v166
    %229 = vst [vmem:[#allocation2 + $0x10] sm:$0xf] %v186
    %230 = vst [vmem:[#allocation2 + $0x18] sm:$0xf] %v206
    %231 = vst [vmem:[#allocation2 + $0x20] sm:$0xf] %v226
    %v232 = vld [vmem:[#allocation4] sm:$0xff]
    %v233 = vld [vmem:[#allocation4 + $0x8] sm:$0xff]
    %s236 = scalar_lea.vmem [#allocation1], 1
    %237 = vst [vmem:[%s236] ss:$2 sm:$0xff] %v232
    %s238 = scalar_lea.vmem [#allocation1], 17
    %239 = vst [vmem:[%s238] ss:$2 sm:$0xff] %v233
    %v240 = vld.sshfl [vmem:[#allocation1] sm:$0xff pattern:$0x75316420]
    %v241 = vld.sshfl [vmem:[#allocation1 + $0x8] sm:$0xff pattern:$0x75316420]
    %v242 = vld.sshfl [vmem:[#allocation1 + $0x10] sm:$0xff pattern:$0x75316420]
    %v243 = vld.sshfl [vmem:[#allocation1 + $0x18] sm:$0xff pattern:$0x75316420]
    %248 = vst [vmem:[#allocation2 + $0x8] sm:$0xf0] %v240
    %249 = vst [vmem:[#allocation2 + $0x10] sm:$0xf0] %v241
    %250 = vst [vmem:[#allocation2 + $0x18] sm:$0xf0] %v242
    %251 = vst [vmem:[#allocation2 + $0x20] sm:$0xf0] %v243
    %v252 = vld [vmem:[#allocation2] sm:$0xff]
    %v253 = vld [vmem:[#allocation2 + $0x8] sm:$0xff]
    %v254 = vld [vmem:[#allocation2 + $0x10] sm:$0xff]
    %v255 = vld [vmem:[#allocation2 + $0x18] sm:$0xff]
    %v256 = vld [vmem:[#allocation2 + $0x20] sm:$0xff]
    %v257 = vld [vmem:[#allocation9] ss:$8 sm:$0xf]
    %v259 = vperm.slane %v257, 0
    %v260 = vperm.slane %v257, 1
    %v261 = vperm.slane %v257, 2
    %v262 = vperm.slane %v257, 3
    %263 = vrot.lane.b32.xlu0 %v259, 111
    %v264 = vpop.permute.xlu0 %263
    %265 = vrot.lane.b32.xlu0 %v260, 111
    %v266 = vpop.permute.xlu0 %265
    %267 = vrot.lane.b32.xlu0 %v261, 111
    %v268 = vpop.permute.xlu0 %267
    %269 = vrot.lane.b32.xlu0 %v262, 111
    %v270 = vpop.permute.xlu0 %269
    %vm271 = vcmask 908288
    %v272 = vsel %vm271, %v264, %v266
    %v273 = vsel %vm271, %v266, %v268
    %v274 = vsel %vm271, %v268, %v270
    %v280 = vmul.f32 %v252, %v264
    %v281 = vmul.f32 %v253, %v272
    %v282 = vmul.f32 %v254, %v273
    %v283 = vmul.f32 %v255, %v274
    %v284 = vmul.f32 %v256, %v270
    %290 = vrot.lane.b32.xlu0 %v280, 17
    %v291 = vpop.permute.xlu0 %290
    %292 = vrot.lane.b32.xlu0 %v281, 17
    %v293 = vpop.permute.xlu0 %292
    %294 = vrot.lane.b32.xlu0 %v282, 17
    %v295 = vpop.permute.xlu0 %294
    %296 = vrot.lane.b32.xlu0 %v283, 17
    %v297 = vpop.permute.xlu0 %296
    %298 = vrot.lane.b32.xlu0 %v284, 17
    %v299 = vpop.permute.xlu0 %298
    %vm300 = vcmask 138240
    %v301 = vsel %vm300, %v291, %v293
    %v302 = vsel %vm300, %v293, %v295
    %v303 = vsel %vm300, %v295, %v297
    %v304 = vsel %vm300, %v297, %v299
    %309 = vst [vmem:[#allocation3] sm:$0xff] %v301
    %310 = vst [vmem:[#allocation3 + $0x8] sm:$0xff] %v302
    %311 = vst [vmem:[#allocation3 + $0x10] sm:$0xff] %v303
    %312 = vst [vmem:[#allocation3 + $0x18] sm:$0xff] %v304
    %v313 = vld [vmem:[#allocation2] sm:$0xff]
    %v314 = vld [vmem:[#allocation2 + $0x8] sm:$0xff]
    %v315 = vld [vmem:[#allocation2 + $0x10] sm:$0xff]
    %v316 = vld [vmem:[#allocation2 + $0x18] sm:$0xff]
    %v317 = vld [vmem:[#allocation2 + $0x20] sm:$0xff]
    %s318 = scalar_lea.vmem [#allocation9], 1
    %v319 = vld [vmem:[%s318] ss:$8 sm:$0xf]
    %v321 = vperm.slane %v319, 0
    %v322 = vperm.slane %v319, 1
    %v323 = vperm.slane %v319, 2
    %v324 = vperm.slane %v319, 3
    %325 = vrot.lane.b32.xlu0 %v321, 112
    %v326 = vpop.permute.xlu0 %325
    %327 = vrot.lane.b32.xlu0 %v322, 112
    %v328 = vpop.permute.xlu0 %327
    %329 = vrot.lane.b32.xlu0 %v323, 112
    %v330 = vpop.permute.xlu0 %329
    %331 = vrot.lane.b32.xlu0 %v324, 112
    %v332 = vpop.permute.xlu0 %331
    %vm333 = vcmask 916480
    %v334 = vsel %vm333, %v326, %v328
    %v335 = vsel %vm333, %v328, %v330
    %v336 = vsel %vm333, %v330, %v332
    %v342 = vmul.f32 %v313, %v326
    %v343 = vmul.f32 %v314, %v334
    %v344 = vmul.f32 %v315, %v335
    %v345 = vmul.f32 %v316, %v336
    %v346 = vmul.f32 %v317, %v332
    %352 = vrot.lane.b32.xlu0 %v342, 16
    %v353 = vpop.permute.xlu0 %352
    %354 = vrot.lane.b32.xlu0 %v343, 16
    %v355 = vpop.permute.xlu0 %354
    %356 = vrot.lane.b32.xlu0 %v344, 16
    %v357 = vpop.permute.xlu0 %356
    %358 = vrot.lane.b32.xlu0 %v345, 16
    %v359 = vpop.permute.xlu0 %358
    %360 = vrot.lane.b32.xlu0 %v346, 16
    %v361 = vpop.permute.xlu0 %360
    %vm362 = vcmask 130048
    %v363 = vsel %vm362, %v353, %v355
    %v364 = vsel %vm362, %v355, %v357
    %v365 = vsel %vm362, %v357, %v359
    %v366 = vsel %vm362, %v359, %v361
    %371 = vst [vmem:[#allocation3 + $0x20] sm:$0xff] %v363
    %372 = vst [vmem:[#allocation3 + $0x28] sm:$0xff] %v364
    %373 = vst [vmem:[#allocation3 + $0x30] sm:$0xff] %v365
    %374 = vst [vmem:[#allocation3 + $0x38] sm:$0xff] %v366
    %v375 = vld [vmem:[#allocation2] sm:$0xff]
    %v376 = vld [vmem:[#allocation2 + $0x8] sm:$0xff]
    %v377 = vld [vmem:[#allocation2 + $0x10] sm:$0xff]
    %v378 = vld [vmem:[#allocation2 + $0x18] sm:$0xff]
    %v379 = vld [vmem:[#allocation2 + $0x20] sm:$0xff]
    %s380 = scalar_lea.vmem [#allocation9], 2
    %v381 = vld [vmem:[%s380] ss:$8 sm:$0xf]
    %v383 = vperm.slane %v381, 0
    %v384 = vperm.slane %v381, 1
    %v385 = vperm.slane %v381, 2
    %v386 = vperm.slane %v381, 3
    %387 = vrot.lane.b32.xlu0 %v383, 113
    %v388 = vpop.permute.xlu0 %387
    %389 = vrot.lane.b32.xlu0 %v384, 113
    %v390 = vpop.permute.xlu0 %389
    %391 = vrot.lane.b32.xlu0 %v385, 113
    %v392 = vpop.permute.xlu0 %391
    %393 = vrot.lane.b32.xlu0 %v386, 113
    %v394 = vpop.permute.xlu0 %393
    %vm395 = vcmask 924672
    %v396 = vsel %vm395, %v388, %v390
    %v397 = vsel %vm395, %v390, %v392
    %v398 = vsel %vm395, %v392, %v394
    %v404 = vmul.f32 %v375, %v388
    %v405 = vmul.f32 %v376, %v396
    %v406 = vmul.f32 %v377, %v397
    %v407 = vmul.f32 %v378, %v398
    %v408 = vmul.f32 %v379, %v394
    %414 = vrot.lane.b32.xlu0 %v404, 15
    %v415 = vpop.permute.xlu0 %414
    %416 = vrot.lane.b32.xlu0 %v405, 15
    %v417 = vpop.permute.xlu0 %416
    %418 = vrot.lane.b32.xlu0 %v406, 15
    %v419 = vpop.permute.xlu0 %418
    %420 = vrot.lane.b32.xlu0 %v407, 15
    %v421 = vpop.permute.xlu0 %420
    %422 = vrot.lane.b32.xlu0 %v408, 15
    %v423 = vpop.permute.xlu0 %422
    %vm424 = vcmask 121856
    %v425 = vsel %vm424, %v415, %v417
    %v426 = vsel %vm424, %v417, %v419
    %v427 = vsel %vm424, %v419, %v421
    %v428 = vsel %vm424, %v421, %v423
    %433 = vst [vmem:[#allocation3 + $0x40] sm:$0xff] %v425
    %434 = vst [vmem:[#allocation3 + $0x48] sm:$0xff] %v426
    %435 = vst [vmem:[#allocation3 + $0x50] sm:$0xff] %v427
    %436 = vst [vmem:[#allocation3 + $0x58] sm:$0xff] %v428
    %v437 = vld [vmem:[#allocation2] sm:$0xff]
    %v438 = vld [vmem:[#allocation2 + $0x8] sm:$0xff]
    %v439 = vld [vmem:[#allocation2 + $0x10] sm:$0xff]
    %v440 = vld [vmem:[#allocation2 + $0x18] sm:$0xff]
    %v441 = vld [vmem:[#allocation2 + $0x20] sm:$0xff]
    %s442 = scalar_lea.vmem [#allocation9], 3
    %v443 = vld [vmem:[%s442] ss:$8 sm:$0xf]
    %v445 = vperm.slane %v443, 0
    %v446 = vperm.slane %v443, 1
    %v447 = vperm.slane %v443, 2
    %v448 = vperm.slane %v443, 3
    %449 = vrot.lane.b32.xlu0 %v445, 127
    %v450 = vpop.permute.xlu0 %449
    %451 = vrot.lane.b32.xlu0 %v446, 127
    %v452 = vpop.permute.xlu0 %451
    %453 = vrot.lane.b32.xlu0 %v447, 127
    %v454 = vpop.permute.xlu0 %453
    %455 = vrot.lane.b32.xlu0 %v448, 127
    %v456 = vpop.permute.xlu0 %455
    %vm457 = vcmask 1039360
    %v458 = vsel %vm457, %v450, %v452
    %v459 = vsel %vm457, %v452, %v454
    %v460 = vsel %vm457, %v454, %v456
    %v466 = vmul.f32 %v437, %v450
    %v467 = vmul.f32 %v438, %v458
    %v468 = vmul.f32 %v439, %v459
    %v469 = vmul.f32 %v440, %v460
    %v470 = vmul.f32 %v441, %v456
    %476 = vrot.lane.b32.xlu0 %v466, 1
    %v477 = vpop.permute.xlu0 %476
    %478 = vrot.lane.b32.xlu0 %v467, 1
    %v479 = vpop.permute.xlu0 %478
    %480 = vrot.lane.b32.xlu0 %v468, 1
    %v481 = vpop.permute.xlu0 %480
    %482 = vrot.lane.b32.xlu0 %v469, 1
    %v483 = vpop.permute.xlu0 %482
    %484 = vrot.lane.b32.xlu0 %v470, 1
    %v485 = vpop.permute.xlu0 %484
    %vm486 = vcmask 7168
    %v487 = vsel %vm486, %v477, %v479
    %v488 = vsel %vm486, %v479, %v481
    %v489 = vsel %vm486, %v481, %v483
    %v490 = vsel %vm486, %v483, %v485
    %495 = vst [vmem:[#allocation3 + $0x60] sm:$0xff] %v487
    %496 = vst [vmem:[#allocation3 + $0x68] sm:$0xff] %v488
    %497 = vst [vmem:[#allocation3 + $0x70] sm:$0xff] %v489
    %498 = vst [vmem:[#allocation3 + $0x78] sm:$0xff] %v490
    %v499 = vld [vmem:[#allocation2 + $0x8] sm:$0xff]
    %v500 = vld [vmem:[#allocation2 + $0x10] sm:$0xff]
    %v501 = vld [vmem:[#allocation2 + $0x18] sm:$0xff]
    %v502 = vld [vmem:[#allocation2 + $0x20] sm:$0xff]
    %503 = vst [vmem:[#allocation3 + $0x80] sm:$0xff] %v499
    %504 = vst [vmem:[#allocation3 + $0x88] sm:$0xff] %v500
    %505 = vst [vmem:[#allocation3 + $0x90] sm:$0xff] %v501
    %506 = vst [vmem:[#allocation3 + $0x98] sm:$0xff] %v502
    %v507 = vld [vmem:[#allocation2 + $0x8] sm:$0xff]
    %v508 = vld [vmem:[#allocation2 + $0x10] sm:$0xff]
    %v509 = vld [vmem:[#allocation2 + $0x18] sm:$0xff]
    %v510 = vld [vmem:[#allocation2 + $0x20] sm:$0xff]
    %v511 = vld [vmem:[#allocation2 + $0x28] sm:$0xff]
    %s512 = scalar_lea.vmem [#allocation9], 5
    %v513 = vld [vmem:[%s512] ss:$8 sm:$0xf]
    %v515 = vperm.slane %v513, 0
    %v516 = vperm.slane %v513, 1
    %v517 = vperm.slane %v513, 2
    %v518 = vperm.slane %v513, 3
    %519 = vrot.lane.b32.xlu0 %v515, 1
    %v520 = vpop.permute.xlu0 %519
    %521 = vrot.lane.b32.xlu0 %v516, 1
    %v522 = vpop.permute.xlu0 %521
    %523 = vrot.lane.b32.xlu0 %v517, 1
    %v524 = vpop.permute.xlu0 %523
    %525 = vrot.lane.b32.xlu0 %v518, 1
    %v526 = vpop.permute.xlu0 %525
    %v527 = vsel %vm486, %v520, %v522
    %v528 = vsel %vm486, %v522, %v524
    %v529 = vsel %vm486, %v524, %v526
    %v535 = vmul.f32 %v507, %v520
    %v536 = vmul.f32 %v508, %v527
    %v537 = vmul.f32 %v509, %v528
    %v538 = vmul.f32 %v510, %v529
    %v539 = vmul.f32 %v511, %v526
    %545 = vrot.lane.b32.xlu0 %v535, 127
    %v546 = vpop.permute.xlu0 %545
    %547 = vrot.lane.b32.xlu0 %v536, 127
    %v548 = vpop.permute.xlu0 %547
    %549 = vrot.lane.b32.xlu0 %v537, 127
    %v550 = vpop.permute.xlu0 %549
    %551 = vrot.lane.b32.xlu0 %v538, 127
    %v552 = vpop.permute.xlu0 %551
    %553 = vrot.lane.b32.xlu0 %v539, 127
    %v554 = vpop.permute.xlu0 %553
    %v555 = vsel %vm457, %v546, %v548
    %v556 = vsel %vm457, %v548, %v550
    %v557 = vsel %vm457, %v550, %v552
    %v558 = vsel %vm457, %v552, %v554
    %563 = vst [vmem:[#allocation3 + $0xa0] sm:$0xff] %v555
    %564 = vst [vmem:[#allocation3 + $0xa8] sm:$0xff] %v556
    %565 = vst [vmem:[#allocation3 + $0xb0] sm:$0xff] %v557
    %566 = vst [vmem:[#allocation3 + $0xb8] sm:$0xff] %v558
    %v567 = vld [vmem:[#allocation2 + $0x8] sm:$0xff]
    %v568 = vld [vmem:[#allocation2 + $0x10] sm:$0xff]
    %v569 = vld [vmem:[#allocation2 + $0x18] sm:$0xff]
    %v570 = vld [vmem:[#allocation2 + $0x20] sm:$0xff]
    %v571 = vld [vmem:[#allocation2 + $0x28] sm:$0xff]
    %s572 = scalar_lea.vmem [#allocation9], 6
    %v573 = vld [vmem:[%s572] ss:$8 sm:$0xf]
    %v575 = vperm.slane %v573, 0
    %v576 = vperm.slane %v573, 1
    %v577 = vperm.slane %v573, 2
    %v578 = vperm.slane %v573, 3
    %579 = vrot.lane.b32.xlu0 %v575, 15
    %v580 = vpop.permute.xlu0 %579
    %581 = vrot.lane.b32.xlu0 %v576, 15
    %v582 = vpop.permute.xlu0 %581
    %583 = vrot.lane.b32.xlu0 %v577, 15
    %v584 = vpop.permute.xlu0 %583
    %585 = vrot.lane.b32.xlu0 %v578, 15
    %v586 = vpop.permute.xlu0 %585
    %v587 = vsel %vm424, %v580, %v582
    %v588 = vsel %vm424, %v582, %v584
    %v589 = vsel %vm424, %v584, %v586
    %v595 = vmul.f32 %v567, %v580
    %v596 = vmul.f32 %v568, %v587
    %v597 = vmul.f32 %v569, %v588
    %v598 = vmul.f32 %v570, %v589
    %v599 = vmul.f32 %v571, %v586
    %605 = vrot.lane.b32.xlu0 %v595, 113
    %v606 = vpop.permute.xlu0 %605
    %607 = vrot.lane.b32.xlu0 %v596, 113
    %v608 = vpop.permute.xlu0 %607
    %609 = vrot.lane.b32.xlu0 %v597, 113
    %v610 = vpop.permute.xlu0 %609
    %611 = vrot.lane.b32.xlu0 %v598, 113
    %v612 = vpop.permute.xlu0 %611
    %613 = vrot.lane.b32.xlu0 %v599, 113
    %v614 = vpop.permute.xlu0 %613
    %v615 = vsel %vm395, %v606, %v608
    %v616 = vsel %vm395, %v608, %v610
    %v617 = vsel %vm395, %v610, %v612
    %v618 = vsel %vm395, %v612, %v614
    %623 = vst [vmem:[#allocation3 + $0xc0] sm:$0xff] %v615
    %624 = vst [vmem:[#allocation3 + $0xc8] sm:$0xff] %v616
    %625 = vst [vmem:[#allocation3 + $0xd0] sm:$0xff] %v617
    %626 = vst [vmem:[#allocation3 + $0xd8] sm:$0xff] %v618
    %v627 = vld [vmem:[#allocation2 + $0x8] sm:$0xff]
    %v628 = vld [vmem:[#allocation2 + $0x10] sm:$0xff]
    %v629 = vld [vmem:[#allocation2 + $0x18] sm:$0xff]
    %v630 = vld [vmem:[#allocation2 + $0x20] sm:$0xff]
    %v631 = vld [vmem:[#allocation2 + $0x28] sm:$0xff]
    %s632 = scalar_lea.vmem [#allocation9], 7
    %v633 = vld [vmem:[%s632] ss:$8 sm:$0xf]
    %v635 = vperm.slane %v633, 0
    %v636 = vperm.slane %v633, 1
    %v637 = vperm.slane %v633, 2
    %v638 = vperm.slane %v633, 3
    %639 = vrot.lane.b32.xlu0 %v635, 16
    %v640 = vpop.permute.xlu0 %639
    %641 = vrot.lane.b32.xlu0 %v636, 16
    %v642 = vpop.permute.xlu0 %641
    %643 = vrot.lane.b32.xlu0 %v637, 16
    %v644 = vpop.permute.xlu0 %643
    %645 = vrot.lane.b32.xlu0 %v638, 16
    %v646 = vpop.permute.xlu0 %645
    %v647 = vsel %vm362, %v640, %v642
    %v648 = vsel %vm362, %v642, %v644
    %v649 = vsel %vm362, %v644, %v646
    %v655 = vmul.f32 %v627, %v640
    %v656 = vmul.f32 %v628, %v647
    %v657 = vmul.f32 %v629, %v648
    %v658 = vmul.f32 %v630, %v649
    %v659 = vmul.f32 %v631, %v646
    %665 = vrot.lane.b32.xlu0 %v655, 112
    %v666 = vpop.permute.xlu0 %665
    %667 = vrot.lane.b32.xlu0 %v656, 112
    %v668 = vpop.permute.xlu0 %667
    %669 = vrot.lane.b32.xlu0 %v657, 112
    %v670 = vpop.permute.xlu0 %669
    %671 = vrot.lane.b32.xlu0 %v658, 112
    %v672 = vpop.permute.xlu0 %671
    %673 = vrot.lane.b32.xlu0 %v659, 112
    %v674 = vpop.permute.xlu0 %673
    %v675 = vsel %vm333, %v666, %v668
    %v676 = vsel %vm333, %v668, %v670
    %v677 = vsel %vm333, %v670, %v672
    %v678 = vsel %vm333, %v672, %v674
    %683 = vst [vmem:[#allocation3 + $0xe0] sm:$0xff] %v675
    %684 = vst [vmem:[#allocation3 + $0xe8] sm:$0xff] %v676
    %685 = vst [vmem:[#allocation3 + $0xf0] sm:$0xff] %v677
    %686 = vst [vmem:[#allocation3 + $0xf8] sm:$0xff] %v678
    %v687 = vld [vmem:[#allocation2 + $0x8] sm:$0xff]
    %v688 = vld [vmem:[#allocation2 + $0x10] sm:$0xff]
    %v689 = vld [vmem:[#allocation2 + $0x18] sm:$0xff]
    %v690 = vld [vmem:[#allocation2 + $0x20] sm:$0xff]
    %v691 = vld [vmem:[#allocation2 + $0x28] sm:$0xff]
    %s692 = scalar_lea.vmem [#allocation9], 32
    %v693 = vld [vmem:[%s692] ss:$8 sm:$0xf]
    %v695 = vperm.slane %v693, 0
    %v696 = vperm.slane %v693, 1
    %v697 = vperm.slane %v693, 2
    %v698 = vperm.slane %v693, 3
    %699 = vrot.lane.b32.xlu0 %v695, 17
    %v700 = vpop.permute.xlu0 %699
    %701 = vrot.lane.b32.xlu0 %v696, 17
    %v702 = vpop.permute.xlu0 %701
    %703 = vrot.lane.b32.xlu0 %v697, 17
    %v704 = vpop.permute.xlu0 %703
    %705 = vrot.lane.b32.xlu0 %v698, 17
    %v706 = vpop.permute.xlu0 %705
    %v707 = vsel %vm300, %v700, %v702
    %v708 = vsel %vm300, %v702, %v704
    %v709 = vsel %vm300, %v704, %v706
    %v715 = vmul.f32 %v687, %v700
    %v716 = vmul.f32 %v688, %v707
    %v717 = vmul.f32 %v689, %v708
    %v718 = vmul.f32 %v690, %v709
    %v719 = vmul.f32 %v691, %v706
    %725 = vrot.lane.b32.xlu0 %v715, 111
    %v726 = vpop.permute.xlu0 %725
    %727 = vrot.lane.b32.xlu0 %v716, 111
    %v728 = vpop.permute.xlu0 %727
    %729 = vrot.lane.b32.xlu0 %v717, 111
    %v730 = vpop.permute.xlu0 %729
    %731 = vrot.lane.b32.xlu0 %v718, 111
    %v732 = vpop.permute.xlu0 %731
    %733 = vrot.lane.b32.xlu0 %v719, 111
    %v734 = vpop.permute.xlu0 %733
    %v735 = vsel %vm271, %v726, %v728
    %v736 = vsel %vm271, %v728, %v730
    %v737 = vsel %vm271, %v730, %v732
    %v738 = vsel %vm271, %v732, %v734
    %743 = vst [vmem:[#allocation3 + $0x100] sm:$0xff] %v735
    %744 = vst [vmem:[#allocation3 + $0x108] sm:$0xff] %v736
    %745 = vst [vmem:[#allocation3 + $0x110] sm:$0xff] %v737
    %746 = vst [vmem:[#allocation3 + $0x118] sm:$0xff] %v738
    %v747 = vld [vmem:[%s4] sm:$0xf]
    %v748 = vld [vmem:[#allocation3] sm:$0xff]
    %v749 = vld [vmem:[#allocation3 + $0x8] sm:$0xff]
    %v750 = vld [vmem:[#allocation3 + $0x10] sm:$0xff]
    %v751 = vld [vmem:[#allocation3 + $0x18] sm:$0xff]
    %v752 = vld [vmem:[#allocation3 + $0x20] sm:$0xff]
    %v753 = vld [vmem:[#allocation3 + $0x28] sm:$0xff]
    %v754 = vld [vmem:[#allocation3 + $0x30] sm:$0xff]
    %v755 = vld [vmem:[#allocation3 + $0x38] sm:$0xff]
    %v756 = vld [vmem:[#allocation3 + $0x40] sm:$0xff]
    %v757 = vld [vmem:[#allocation3 + $0x48] sm:$0xff]
    %v758 = vld [vmem:[#allocation3 + $0x50] sm:$0xff]
    %v759 = vld [vmem:[#allocation3 + $0x58] sm:$0xff]
    %v760 = vld [vmem:[#allocation3 + $0x60] sm:$0xff]
    %v761 = vld [vmem:[#allocation3 + $0x68] sm:$0xff]
    %v762 = vld [vmem:[#allocation3 + $0x70] sm:$0xff]
    %v763 = vld [vmem:[#allocation3 + $0x78] sm:$0xff]
    %v764 = vld [vmem:[#allocation3 + $0x80] sm:$0xff]
    %v765 = vld [vmem:[#allocation3 + $0x88] sm:$0xff]
    %v766 = vld [vmem:[#allocation3 + $0x90] sm:$0xff]
    %v767 = vld [vmem:[#allocation3 + $0x98] sm:$0xff]
    %v768 = vld [vmem:[#allocation3 + $0xa0] sm:$0xff]
    %v769 = vld [vmem:[#allocation3 + $0xa8] sm:$0xff]
    %v770 = vld [vmem:[#allocation3 + $0xb0] sm:$0xff]
    %v771 = vld [vmem:[#allocation3 + $0xb8] sm:$0xff]
    %v772 = vld [vmem:[#allocation3 + $0xc0] sm:$0xff]
    %v773 = vld [vmem:[#allocation3 + $0xc8] sm:$0xff]
    %v774 = vld [vmem:[#allocation3 + $0xd0] sm:$0xff]
    %v775 = vld [vmem:[#allocation3 + $0xd8] sm:$0xff]
    %v776 = vld [vmem:[#allocation3 + $0xe0] sm:$0xff]
    %v777 = vld [vmem:[#allocation3 + $0xe8] sm:$0xff]
    %v778 = vld [vmem:[#allocation3 + $0xf0] sm:$0xff]
    %v779 = vld [vmem:[#allocation3 + $0xf8] sm:$0xff]
    %v780 = vld [vmem:[#allocation3 + $0x100] sm:$0xff]
    %v781 = vld [vmem:[#allocation3 + $0x108] sm:$0xff]
    %v782 = vld [vmem:[#allocation3 + $0x110] sm:$0xff]
    %v783 = vld [vmem:[#allocation3 + $0x118] sm:$0xff]
    %vm784 = vcmask 588800
    %v786 = vsel %vm784, %v747, 0
    %788 = vmatpush.msra.mxu0 0.0
    %789 = vmatpush.msra.mxu0 0.0
    %790 = vmatpush.msra.mxu0 0.0
    %791 = vmatpush.msra.mxu0 0.0
    %792 = vmatpush.msra.mxu0 0.0
    %793 = vmatpush.msra.mxu0 0.0
    %794 = vmatpush.msra.mxu0 0.0
    %795 = vmatpush.msra.mxu0 %v780
    %796 = vmatpush.msra.mxu0 %v776
    %797 = vmatpush.msra.mxu0 %v772
    %798 = vmatpush.msra.mxu0 %v768
    %799 = vmatpush.msra.mxu0 %v764
    %800 = vmatpush.msra.mxu0 %v760
    %801 = vmatpush.msra.mxu0 %v756
    %802 = vmatpush.msra.mxu0 %v752
    %803 = vmatpush.msra.mxu0 %v748
    %804 = vmatmul.f32.gmra.mxu0 %v786
    %v805 = vpop.f32.mrf.mxu0
    %v806 = vadd.f32 0.0, %v805
    %807 = vdwg.mxu0
    %808 = vmatpush.msra.mxu0 0.0
    %809 = vmatpush.msra.mxu0 0.0
    %810 = vmatpush.msra.mxu0 0.0
    %811 = vmatpush.msra.mxu0 0.0
    %812 = vmatpush.msra.mxu0 0.0
    %813 = vmatpush.msra.mxu0 0.0
    %814 = vmatpush.msra.mxu0 0.0
    %815 = vmatpush.msra.mxu0 %v781
    %816 = vmatpush.msra.mxu0 %v777
    %817 = vmatpush.msra.mxu0 %v773
    %818 = vmatpush.msra.mxu0 %v769
    %819 = vmatpush.msra.mxu0 %v765
    %820 = vmatpush.msra.mxu0 %v761
    %821 = vmatpush.msra.mxu0 %v757
    %822 = vmatpush.msra.mxu0 %v753
    %823 = vmatpush.msra.mxu0 %v749
    %824 = vmatmul.f32.gmra.mxu0 %v786
    %v825 = vpop.f32.mrf.mxu0
    %v826 = vadd.f32 0.0, %v825
    %827 = vdwg.mxu0
    %828 = vmatpush.msra.mxu0 0.0
    %829 = vmatpush.msra.mxu0 0.0
    %830 = vmatpush.msra.mxu0 0.0
    %831 = vmatpush.msra.mxu0 0.0
    %832 = vmatpush.msra.mxu0 0.0
    %833 = vmatpush.msra.mxu0 0.0
    %834 = vmatpush.msra.mxu0 0.0
    %835 = vmatpush.msra.mxu0 %v782
    %836 = vmatpush.msra.mxu0 %v778
    %837 = vmatpush.msra.mxu0 %v774
    %838 = vmatpush.msra.mxu0 %v770
    %839 = vmatpush.msra.mxu0 %v766
    %840 = vmatpush.msra.mxu0 %v762
    %841 = vmatpush.msra.mxu0 %v758
    %842 = vmatpush.msra.mxu0 %v754
    %843 = vmatpush.msra.mxu0 %v750
    %844 = vmatmul.f32.gmra.mxu0 %v786
    %v845 = vpop.f32.mrf.mxu0
    %v846 = vadd.f32 0.0, %v845
    %847 = vdwg.mxu0
    %848 = vmatpush.msra.mxu0 0.0
    %849 = vmatpush.msra.mxu0 0.0
    %850 = vmatpush.msra.mxu0 0.0
    %851 = vmatpush.msra.mxu0 0.0
    %852 = vmatpush.msra.mxu0 0.0
    %853 = vmatpush.msra.mxu0 0.0
    %854 = vmatpush.msra.mxu0 0.0
    %855 = vmatpush.msra.mxu0 %v783
    %856 = vmatpush.msra.mxu0 %v779
    %857 = vmatpush.msra.mxu0 %v775
    %858 = vmatpush.msra.mxu0 %v771
    %859 = vmatpush.msra.mxu0 %v767
    %860 = vmatpush.msra.mxu0 %v763
    %861 = vmatpush.msra.mxu0 %v759
    %862 = vmatpush.msra.mxu0 %v755
    %863 = vmatpush.msra.mxu0 %v751
    %864 = vmatmul.f32.gmra.mxu0 %v786
    %v865 = vpop.f32.mrf.mxu0
    %v866 = vadd.f32 0.0, %v865
    %867 = vdwg.mxu0
    %vm868 = vcmask 1043456
    %v869 = vsel %vm868, %v806, 0.0
    %v870 = vsel %vm868, %v826, 0.0
    %v871 = vadd.f32 %v869, %v870
    %v872 = vsel %vm868, %v846, 0.0
    %v873 = vadd.f32 %v871, %v872
    %v874 = vsel %vm868, %v866, 0.0
    %v875 = vadd.f32 %v873, %v874
    %876 = vadd.xlane.f32.xlu0 %v875
    %v877 = vpop.xlane.xlu0 %876
    %v878 = vrcp.pop 512.0
    %v879 = vmul.f32 512.0, %v878
    %v880 = vsub.f32 1.0, %v879
    %v881 = vmul.f32 %v878, %v880
    %v882 = vadd.f32 %v878, %v881
    %vm883 = vweird.f32 %v878
    %v884 = vsel %vm883, %v878, %v882
    %v885 = vmul.f32 %v877, %v884
    %v886 = vsub.f32 %v806, %v885
    %v887 = vsub.f32 %v826, %v885
    %v888 = vsub.f32 %v846, %v885
    %v889 = vsub.f32 %v866, %v885
    %v890 = vmul.f32 %v886, %v886
    %v891 = vmul.f32 %v887, %v887
    %v892 = vmul.f32 %v888, %v888
    %v893 = vmul.f32 %v889, %v889
    %v894 = vsel %vm868, %v890, 0.0
    %v895 = vsel %vm868, %v891, 0.0
    %v896 = vadd.f32 %v894, %v895
    %v897 = vsel %vm868, %v892, 0.0
    %v898 = vadd.f32 %v896, %v897
    %v899 = vsel %vm868, %v893, 0.0
    %v900 = vadd.f32 %v898, %v899
    %901 = vadd.xlane.f32.xlu0 %v900
    %v902 = vpop.xlane.xlu0 %901
    %v903 = vmul.f32 %v902, %v884
    %v904 = vld [vmem:[%s5] sm:$0xf]
    %v905 = vadd.f32 %v903, 1e-05
    %v906 = vrsqrt.pop %v905
    %v907 = vmul.f32 %v906, %v905
    %v908 = vmul.f32 %v907, %v906
    %v909 = vmul.f32 0.5, %v908
    %v910 = vsub.f32 1.5, %v909
    %v911 = vmul.f32 %v906, %v910
    %vm912 = vweird.f32 %v905
    %vm913 = vweird.f32 %v906
    %vm914 = vmor %vm912, %vm913
    %v915 = vsel %vm914, %v906, %v911
    %v916 = vmul.f32 %v904, %v915
    %918 = vset.pattern.permute.xlu0 0
    %919 = vperm.xlu0 %918, %v916
    %v920 = vpop.permute.xlu0 %919
    %v922 = vmul.f32 %v886, %v920
    %v923 = vmul.f32 %v887, %v920
    %v924 = vmul.f32 %v888, %v920
    %v925 = vmul.f32 %v889, %v920
    %v926 = vld [vmem:[%s6] sm:$0xf]
    %928 = vset.pattern.permute.xlu0 0
    %929 = vperm.xlu0 %928, %v926
    %v930 = vpop.permute.xlu0 %929
    %v932 = vadd.f32 %v922, %v930
    %v933 = vadd.f32 %v923, %v930
    %v934 = vadd.f32 %v924, %v930
    %v935 = vadd.f32 %v925, %v930
    %v936 = vmax.f32 %v932, 0.0
    %v937 = vmax.f32 %v933, 0.0
    %v938 = vmax.f32 %v934, 0.0
    %v939 = vmax.f32 %v935, 0.0
    %940 = vst [vmem:[#allocation2 + $0x8] sm:$0xf] %v936
    %941 = vst [vmem:[#allocation2 + $0x10] sm:$0xf] %v937
    %942 = vst [vmem:[#allocation2 + $0x18] sm:$0xf] %v938
    %943 = vst [vmem:[#allocation2 + $0x20] sm:$0xf] %v939
    %v944 = vld [vmem:[#allocation2] sm:$0xf]
    %v945 = vld [vmem:[#allocation2 + $0x8] sm:$0xf]
    %v946 = vld [vmem:[#allocation2 + $0x10] sm:$0xf]
    %v947 = vld [vmem:[#allocation2 + $0x18] sm:$0xf]
    %v948 = vld [vmem:[#allocation2 + $0x20] sm:$0xf]
    %v949 = vld [vmem:[#allocation9] ss:$8 sm:$0xf]
    %v951 = vperm.slane %v949, 0
    %v952 = vperm.slane %v949, 1
    %v953 = vperm.slane %v949, 2
    %v954 = vperm.slane %v949, 3
    %955 = vrot.lane.b32.xlu0 %v951, 111
    %v956 = vpop.permute.xlu0 %955
    %957 = vrot.lane.b32.xlu0 %v952, 111
    %v958 = vpop.permute.xlu0 %957
    %959 = vrot.lane.b32.xlu0 %v953, 111
    %v960 = vpop.permute.xlu0 %959
    %961 = vrot.lane.b32.xlu0 %v954, 111
    %v962 = vpop.permute.xlu0 %961
    %v963 = vsel %vm271, %v956, %v958
    %v964 = vsel %vm271, %v958, %v960
    %v965 = vsel %vm271, %v960, %v962
    %v971 = vmul.f32 %v944, %v956
    %v972 = vmul.f32 %v945, %v963
    %v973 = vmul.f32 %v946, %v964
    %v974 = vmul.f32 %v947, %v965
    %v975 = vmul.f32 %v948, %v962
    %981 = vrot.lane.b32.xlu0 %v971, 17
    %v982 = vpop.permute.xlu0 %981
    %983 = vrot.lane.b32.xlu0 %v972, 17
    %v984 = vpop.permute.xlu0 %983
    %985 = vrot.lane.b32.xlu0 %v973, 17
    %v986 = vpop.permute.xlu0 %985
    %987 = vrot.lane.b32.xlu0 %v974, 17
    %v988 = vpop.permute.xlu0 %987
    %989 = vrot.lane.b32.xlu0 %v975, 17
    %v990 = vpop.permute.xlu0 %989
    %v991 = vsel %vm300, %v982, %v984
    %v992 = vsel %vm300, %v984, %v986
    %v993 = vsel %vm300, %v986, %v988
    %v994 = vsel %vm300, %v988, %v990
    %999 = vst [vmem:[#allocation3] sm:$0xf] %v991
    %1000 = vst [vmem:[#allocation3 + $0x8] sm:$0xf] %v992
    %1001 = vst [vmem:[#allocation3 + $0x10] sm:$0xf] %v993
    %1002 = vst [vmem:[#allocation3 + $0x18] sm:$0xf] %v994
    %v1003 = vld [vmem:[#allocation2] sm:$0xf]
    %v1004 = vld [vmem:[#allocation2 + $0x8] sm:$0xf]
    %v1005 = vld [vmem:[#allocation2 + $0x10] sm:$0xf]
    %v1006 = vld [vmem:[#allocation2 + $0x18] sm:$0xf]
    %v1007 = vld [vmem:[#allocation2 + $0x20] sm:$0xf]
    %v1008 = vld [vmem:[%s318] ss:$8 sm:$0xf]
    %v1010 = vperm.slane %v1008, 0
    %v1011 = vperm.slane %v1008, 1
    %v1012 = vperm.slane %v1008, 2
    %v1013 = vperm.slane %v1008, 3
    %1014 = vrot.lane.b32.xlu0 %v1010, 112
    %v1015 = vpop.permute.xlu0 %1014
    %1016 = vrot.lane.b32.xlu0 %v1011, 112
    %v1017 = vpop.permute.xlu0 %1016
    %1018 = vrot.lane.b32.xlu0 %v1012, 112
    %v1019 = vpop.permute.xlu0 %1018
    %1020 = vrot.lane.b32.xlu0 %v1013, 112
    %v1021 = vpop.permute.xlu0 %1020
    %v1022 = vsel %vm333, %v1015, %v1017
    %v1023 = vsel %vm333, %v1017, %v1019
    %v1024 = vsel %vm333, %v1019, %v1021
    %v1030 = vmul.f32 %v1003, %v1015
    %v1031 = vmul.f32 %v1004, %v1022
    %v1032 = vmul.f32 %v1005, %v1023
    %v1033 = vmul.f32 %v1006, %v1024
    %v1034 = vmul.f32 %v1007, %v1021
    %1040 = vrot.lane.b32.xlu0 %v1030, 16
    %v1041 = vpop.permute.xlu0 %1040
    %1042 = vrot.lane.b32.xlu0 %v1031, 16
    %v1043 = vpop.permute.xlu0 %1042
    %1044 = vrot.lane.b32.xlu0 %v1032, 16
    %v1045 = vpop.permute.xlu0 %1044
    %1046 = vrot.lane.b32.xlu0 %v1033, 16
    %v1047 = vpop.permute.xlu0 %1046
    %1048 = vrot.lane.b32.xlu0 %v1034, 16
    %v1049 = vpop.permute.xlu0 %1048
    %v1050 = vsel %vm362, %v1041, %v1043
    %v1051 = vsel %vm362, %v1043, %v1045
    %v1052 = vsel %vm362, %v1045, %v1047
    %v1053 = vsel %vm362, %v1047, %v1049
    %1058 = vst [vmem:[#allocation3 + $0x20] sm:$0xf] %v1050
    %1059 = vst [vmem:[#allocation3 + $0x28] sm:$0xf] %v1051
    %1060 = vst [vmem:[#allocation3 + $0x30] sm:$0xf] %v1052
    %1061 = vst [vmem:[#allocation3 + $0x38] sm:$0xf] %v1053
    %v1062 = vld [vmem:[#allocation2] sm:$0xf]
    %v1063 = vld [vmem:[#allocation2 + $0x8] sm:$0xf]
    %v1064 = vld [vmem:[#allocation2 + $0x10] sm:$0xf]
    %v1065 = vld [vmem:[#allocation2 + $0x18] sm:$0xf]
    %v1066 = vld [vmem:[#allocation2 + $0x20] sm:$0xf]
    %v1067 = vld [vmem:[%s380] ss:$8 sm:$0xf]
    %v1069 = vperm.slane %v1067, 0
    %v1070 = vperm.slane %v1067, 1
    %v1071 = vperm.slane %v1067, 2
    %v1072 = vperm.slane %v1067, 3
    %1073 = vrot.lane.b32.xlu0 %v1069, 113
    %v1074 = vpop.permute.xlu0 %1073
    %1075 = vrot.lane.b32.xlu0 %v1070, 113
    %v1076 = vpop.permute.xlu0 %1075
    %1077 = vrot.lane.b32.xlu0 %v1071, 113
    %v1078 = vpop.permute.xlu0 %1077
    %1079 = vrot.lane.b32.xlu0 %v1072, 113
    %v1080 = vpop.permute.xlu0 %1079
    %v1081 = vsel %vm395, %v1074, %v1076
    %v1082 = vsel %vm395, %v1076, %v1078
    %v1083 = vsel %vm395, %v1078, %v1080
    %v1089 = vmul.f32 %v1062, %v1074
    %v1090 = vmul.f32 %v1063, %v1081
    %v1091 = vmul.f32 %v1064, %v1082
    %v1092 = vmul.f32 %v1065, %v1083
    %v1093 = vmul.f32 %v1066, %v1080
    %1099 = vrot.lane.b32.xlu0 %v1089, 15
    %v1100 = vpop.permute.xlu0 %1099
    %1101 = vrot.lane.b32.xlu0 %v1090, 15
    %v1102 = vpop.permute.xlu0 %1101
    %1103 = vrot.lane.b32.xlu0 %v1091, 15
    %v1104 = vpop.permute.xlu0 %1103
    %1105 = vrot.lane.b32.xlu0 %v1092, 15
    %v1106 = vpop.permute.xlu0 %1105
    %1107 = vrot.lane.b32.xlu0 %v1093, 15
    %v1108 = vpop.permute.xlu0 %1107
    %v1109 = vsel %vm424, %v1100, %v1102
    %v1110 = vsel %vm424, %v1102, %v1104
    %v1111 = vsel %vm424, %v1104, %v1106
    %v1112 = vsel %vm424, %v1106, %v1108
    %1117 = vst [vmem:[#allocation3 + $0x40] sm:$0xf] %v1109
    %1118 = vst [vmem:[#allocation3 + $0x48] sm:$0xf] %v1110
    %1119 = vst [vmem:[#allocation3 + $0x50] sm:$0xf] %v1111
    %1120 = vst [vmem:[#allocation3 + $0x58] sm:$0xf] %v1112
    %v1121 = vld [vmem:[#allocation2] sm:$0xf]
    %v1122 = vld [vmem:[#allocation2 + $0x8] sm:$0xf]
    %v1123 = vld [vmem:[#allocation2 + $0x10] sm:$0xf]
    %v1124 = vld [vmem:[#allocation2 + $0x18] sm:$0xf]
    %v1125 = vld [vmem:[#allocation2 + $0x20] sm:$0xf]
    %v1126 = vld [vmem:[%s442] ss:$8 sm:$0xf]
    %v1128 = vperm.slane %v1126, 0
    %v1129 = vperm.slane %v1126, 1
    %v1130 = vperm.slane %v1126, 2
    %v1131 = vperm.slane %v1126, 3
    %1132 = vrot.lane.b32.xlu0 %v1128, 127
    %v1133 = vpop.permute.xlu0 %1132
    %1134 = vrot.lane.b32.xlu0 %v1129, 127
    %v1135 = vpop.permute.xlu0 %1134
    %1136 = vrot.lane.b32.xlu0 %v1130, 127
    %v1137 = vpop.permute.xlu0 %1136
    %1138 = vrot.lane.b32.xlu0 %v1131, 127
    %v1139 = vpop.permute.xlu0 %1138
    %v1140 = vsel %vm457, %v1133, %v1135
    %v1141 = vsel %vm457, %v1135, %v1137
    %v1142 = vsel %vm457, %v1137, %v1139
    %v1148 = vmul.f32 %v1121, %v1133
    %v1149 = vmul.f32 %v1122, %v1140
    %v1150 = vmul.f32 %v1123, %v1141
    %v1151 = vmul.f32 %v1124, %v1142
    %v1152 = vmul.f32 %v1125, %v1139
    %1158 = vrot.lane.b32.xlu0 %v1148, 1
    %v1159 = vpop.permute.xlu0 %1158
    %1160 = vrot.lane.b32.xlu0 %v1149, 1
    %v1161 = vpop.permute.xlu0 %1160
    %1162 = vrot.lane.b32.xlu0 %v1150, 1
    %v1163 = vpop.permute.xlu0 %1162
    %1164 = vrot.lane.b32.xlu0 %v1151, 1
    %v1165 = vpop.permute.xlu0 %1164
    %1166 = vrot.lane.b32.xlu0 %v1152, 1
    %v1167 = vpop.permute.xlu0 %1166
    %v1168 = vsel %vm486, %v1159, %v1161
    %v1169 = vsel %vm486, %v1161, %v1163
    %v1170 = vsel %vm486, %v1163, %v1165
    %v1171 = vsel %vm486, %v1165, %v1167
    %1176 = vst [vmem:[#allocation3 + $0x60] sm:$0xf] %v1168
    %1177 = vst [vmem:[#allocation3 + $0x68] sm:$0xf] %v1169
    %1178 = vst [vmem:[#allocation3 + $0x70] sm:$0xf] %v1170
    %1179 = vst [vmem:[#allocation3 + $0x78] sm:$0xf] %v1171
    %v1180 = vld [vmem:[#allocation2 + $0x8] sm:$0xf]
    %v1181 = vld [vmem:[#allocation2 + $0x10] sm:$0xf]
    %v1182 = vld [vmem:[#allocation2 + $0x18] sm:$0xf]
    %v1183 = vld [vmem:[#allocation2 + $0x20] sm:$0xf]
    %1184 = vst [vmem:[#allocation3 + $0x80] sm:$0xf] %v1180
    %1185 = vst [vmem:[#allocation3 + $0x88] sm:$0xf] %v1181
    %1186 = vst [vmem:[#allocation3 + $0x90] sm:$0xf] %v1182
    %1187 = vst [vmem:[#allocation3 + $0x98] sm:$0xf] %v1183
    %v1188 = vld [vmem:[#allocation2 + $0x8] sm:$0xf]
    %v1189 = vld [vmem:[#allocation2 + $0x10] sm:$0xf]
    %v1190 = vld [vmem:[#allocation2 + $0x18] sm:$0xf]
    %v1191 = vld [vmem:[#allocation2 + $0x20] sm:$0xf]
    %v1192 = vld [vmem:[#allocation2 + $0x28] sm:$0xf]
    %v1193 = vld [vmem:[%s512] ss:$8 sm:$0xf]
    %v1195 = vperm.slane %v1193, 0
    %v1196 = vperm.slane %v1193, 1
    %v1197 = vperm.slane %v1193, 2
    %v1198 = vperm.slane %v1193, 3
    %1199 = vrot.lane.b32.xlu0 %v1195, 1
    %v1200 = vpop.permute.xlu0 %1199
    %1201 = vrot.lane.b32.xlu0 %v1196, 1
    %v1202 = vpop.permute.xlu0 %1201
    %1203 = vrot.lane.b32.xlu0 %v1197, 1
    %v1204 = vpop.permute.xlu0 %1203
    %1205 = vrot.lane.b32.xlu0 %v1198, 1
    %v1206 = vpop.permute.xlu0 %1205
    %v1207 = vsel %vm486, %v1200, %v1202
    %v1208 = vsel %vm486, %v1202, %v1204
    %v1209 = vsel %vm486, %v1204, %v1206
    %v1215 = vmul.f32 %v1188, %v1200
    %v1216 = vmul.f32 %v1189, %v1207
    %v1217 = vmul.f32 %v1190, %v1208
    %v1218 = vmul.f32 %v1191, %v1209
    %v1219 = vmul.f32 %v1192, %v1206
    %1225 = vrot.lane.b32.xlu0 %v1215, 127
    %v1226 = vpop.permute.xlu0 %1225
    %1227 = vrot.lane.b32.xlu0 %v1216, 127
    %v1228 = vpop.permute.xlu0 %1227
    %1229 = vrot.lane.b32.xlu0 %v1217, 127
    %v1230 = vpop.permute.xlu0 %1229
    %1231 = vrot.lane.b32.xlu0 %v1218, 127
    %v1232 = vpop.permute.xlu0 %1231
    %1233 = vrot.lane.b32.xlu0 %v1219, 127
    %v1234 = vpop.permute.xlu0 %1233
    %v1235 = vsel %vm457, %v1226, %v1228
    %v1236 = vsel %vm457, %v1228, %v1230
    %v1237 = vsel %vm457, %v1230, %v1232
    %v1238 = vsel %vm457, %v1232, %v1234
    %1243 = vst [vmem:[#allocation3 + $0xa0] sm:$0xf] %v1235
    %1244 = vst [vmem:[#allocation3 + $0xa8] sm:$0xf] %v1236
    %1245 = vst [vmem:[#allocation3 + $0xb0] sm:$0xf] %v1237
    %1246 = vst [vmem:[#allocation3 + $0xb8] sm:$0xf] %v1238
    %v1247 = vld [vmem:[#allocation2 + $0x8] sm:$0xf]
    %v1248 = vld [vmem:[#allocation2 + $0x10] sm:$0xf]
    %v1249 = vld [vmem:[#allocation2 + $0x18] sm:$0xf]
    %v1250 = vld [vmem:[#allocation2 + $0x20] sm:$0xf]
    %v1251 = vld [vmem:[#allocation2 + $0x28] sm:$0xf]
    %v1252 = vld [vmem:[%s572] ss:$8 sm:$0xf]
    %v1254 = vperm.slane %v1252, 0
    %v1255 = vperm.slane %v1252, 1
    %v1256 = vperm.slane %v1252, 2
    %v1257 = vperm.slane %v1252, 3
    %1258 = vrot.lane.b32.xlu0 %v1254, 15
    %v1259 = vpop.permute.xlu0 %1258
    %1260 = vrot.lane.b32.xlu0 %v1255, 15
    %v1261 = vpop.permute.xlu0 %1260
    %1262 = vrot.lane.b32.xlu0 %v1256, 15
    %v1263 = vpop.permute.xlu0 %1262
    %1264 = vrot.lane.b32.xlu0 %v1257, 15
    %v1265 = vpop.permute.xlu0 %1264
    %v1266 = vsel %vm424, %v1259, %v1261
    %v1267 = vsel %vm424, %v1261, %v1263
    %v1268 = vsel %vm424, %v1263, %v1265
    %v1274 = vmul.f32 %v1247, %v1259
    %v1275 = vmul.f32 %v1248, %v1266
    %v1276 = vmul.f32 %v1249, %v1267
    %v1277 = vmul.f32 %v1250, %v1268
    %v1278 = vmul.f32 %v1251, %v1265
    %1284 = vrot.lane.b32.xlu0 %v1274, 113
    %v1285 = vpop.permute.xlu0 %1284
    %1286 = vrot.lane.b32.xlu0 %v1275, 113
    %v1287 = vpop.permute.xlu0 %1286
    %1288 = vrot.lane.b32.xlu0 %v1276, 113
    %v1289 = vpop.permute.xlu0 %1288
    %1290 = vrot.lane.b32.xlu0 %v1277, 113
    %v1291 = vpop.permute.xlu0 %1290
    %1292 = vrot.lane.b32.xlu0 %v1278, 113
    %v1293 = vpop.permute.xlu0 %1292
    %v1294 = vsel %vm395, %v1285, %v1287
    %v1295 = vsel %vm395, %v1287, %v1289
    %v1296 = vsel %vm395, %v1289, %v1291
    %v1297 = vsel %vm395, %v1291, %v1293
    %1302 = vst [vmem:[#allocation3 + $0xc0] sm:$0xf] %v1294
    %1303 = vst [vmem:[#allocation3 + $0xc8] sm:$0xf] %v1295
    %1304 = vst [vmem:[#allocation3 + $0xd0] sm:$0xf] %v1296
    %1305 = vst [vmem:[#allocation3 + $0xd8] sm:$0xf] %v1297
    %v1306 = vld [vmem:[#allocation2 + $0x8] sm:$0xf]
    %v1307 = vld [vmem:[#allocation2 + $0x10] sm:$0xf]
    %v1308 = vld [vmem:[#allocation2 + $0x18] sm:$0xf]
    %v1309 = vld [vmem:[#allocation2 + $0x20] sm:$0xf]
    %v1310 = vld [vmem:[#allocation2 + $0x28] sm:$0xf]
    %v1311 = vld [vmem:[%s632] ss:$8 sm:$0xf]
    %v1313 = vperm.slane %v1311, 0
    %v1314 = vperm.slane %v1311, 1
    %v1315 = vperm.slane %v1311, 2
    %v1316 = vperm.slane %v1311, 3
    %1317 = vrot.lane.b32.xlu0 %v1313, 16
    %v1318 = vpop.permute.xlu0 %1317
    %1319 = vrot.lane.b32.xlu0 %v1314, 16
    %v1320 = vpop.permute.xlu0 %1319
    %1321 = vrot.lane.b32.xlu0 %v1315, 16
    %v1322 = vpop.permute.xlu0 %1321
    %1323 = vrot.lane.b32.xlu0 %v1316, 16
    %v1324 = vpop.permute.xlu0 %1323
    %v1325 = vsel %vm362, %v1318, %v1320
    %v1326 = vsel %vm362, %v1320, %v1322
    %v1327 = vsel %vm362, %v1322, %v1324
    %v1333 = vmul.f32 %v1306, %v1318
    %v1334 = vmul.f32 %v1307, %v1325
    %v1335 = vmul.f32 %v1308, %v1326
    %v1336 = vmul.f32 %v1309, %v1327
    %v1337 = vmul.f32 %v1310, %v1324
    %1343 = vrot.lane.b32.xlu0 %v1333, 112
    %v1344 = vpop.permute.xlu0 %1343
    %1345 = vrot.lane.b32.xlu0 %v1334, 112
    %v1346 = vpop.permute.xlu0 %1345
    %1347 = vrot.lane.b32.xlu0 %v1335, 112
    %v1348 = vpop.permute.xlu0 %1347
    %1349 = vrot.lane.b32.xlu0 %v1336, 112
    %v1350 = vpop.permute.xlu0 %1349
    %1351 = vrot.lane.b32.xlu0 %v1337, 112
    %v1352 = vpop.permute.xlu0 %1351
    %v1353 = vsel %vm333, %v1344, %v1346
    %v1354 = vsel %vm333, %v1346, %v1348
    %v1355 = vsel %vm333, %v1348, %v1350
    %v1356 = vsel %vm333, %v1350, %v1352
    %1361 = vst [vmem:[#allocation3 + $0xe0] sm:$0xf] %v1353
    %1362 = vst [vmem:[#allocation3 + $0xe8] sm:$0xf] %v1354
    %1363 = vst [vmem:[#allocation3 + $0xf0] sm:$0xf] %v1355
    %1364 = vst [vmem:[#allocation3 + $0xf8] sm:$0xf] %v1356
    %v1365 = vld [vmem:[#allocation2 + $0x8] sm:$0xf]
    %v1366 = vld [vmem:[#allocation2 + $0x10] sm:$0xf]
    %v1367 = vld [vmem:[#allocation2 + $0x18] sm:$0xf]
    %v1368 = vld [vmem:[#allocation2 + $0x20] sm:$0xf]
    %v1369 = vld [vmem:[#allocation2 + $0x28] sm:$0xf]
    %v1370 = vld [vmem:[%s692] ss:$8 sm:$0xf]
    %v1372 = vperm.slane %v1370, 0
    %v1373 = vperm.slane %v1370, 1
    %v1374 = vperm.slane %v1370, 2
    %v1375 = vperm.slane %v1370, 3
    %1376 = vrot.lane.b32.xlu0 %v1372, 17
    %v1377 = vpop.permute.xlu0 %1376
    %1378 = vrot.lane.b32.xlu0 %v1373, 17
    %v1379 = vpop.permute.xlu0 %1378
    %1380 = vrot.lane.b32.xlu0 %v1374, 17
    %v1381 = vpop.permute.xlu0 %1380
    %1382 = vrot.lane.b32.xlu0 %v1375, 17
    %v1383 = vpop.permute.xlu0 %1382
    %v1384 = vsel %vm300, %v1377, %v1379
    %v1385 = vsel %vm300, %v1379, %v1381
    %v1386 = vsel %vm300, %v1381, %v1383
    %v1392 = vmul.f32 %v1365, %v1377
    %v1393 = vmul.f32 %v1366, %v1384
    %v1394 = vmul.f32 %v1367, %v1385
    %v1395 = vmul.f32 %v1368, %v1386
    %v1396 = vmul.f32 %v1369, %v1383
    %1402 = vrot.lane.b32.xlu0 %v1392, 111
    %v1403 = vpop.permute.xlu0 %1402
    %1404 = vrot.lane.b32.xlu0 %v1393, 111
    %v1405 = vpop.permute.xlu0 %1404
    %1406 = vrot.lane.b32.xlu0 %v1394, 111
    %v1407 = vpop.permute.xlu0 %1406
    %1408 = vrot.lane.b32.xlu0 %v1395, 111
    %v1409 = vpop.permute.xlu0 %1408
    %1410 = vrot.lane.b32.xlu0 %v1396, 111
    %v1411 = vpop.permute.xlu0 %1410
    %v1412 = vsel %vm271, %v1403, %v1405
    %v1413 = vsel %vm271, %v1405, %v1407
    %v1414 = vsel %vm271, %v1407, %v1409
    %v1415 = vsel %vm271, %v1409, %v1411
    %1420 = vst [vmem:[#allocation3 + $0x100] sm:$0xf] %v1412
    %1421 = vst [vmem:[#allocation3 + $0x108] sm:$0xf] %v1413
    %1422 = vst [vmem:[#allocation3 + $0x110] sm:$0xf] %v1414
    %1423 = vst [vmem:[#allocation3 + $0x118] sm:$0xf] %v1415
    %v1424 = vld [vmem:[%s7] sm:$0xf]
    %v1425 = vld [vmem:[#allocation3] sm:$0xff]
    %v1426 = vld [vmem:[#allocation3 + $0x8] sm:$0xff]
    %v1427 = vld [vmem:[#allocation3 + $0x10] sm:$0xff]
    %v1428 = vld [vmem:[#allocation3 + $0x18] sm:$0xff]
    %v1429 = vld [vmem:[#allocation3 + $0x20] sm:$0xff]
    %v1430 = vld [vmem:[#allocation3 + $0x28] sm:$0xff]
    %v1431 = vld [vmem:[#allocation3 + $0x30] sm:$0xff]
    %v1432 = vld [vmem:[#allocation3 + $0x38] sm:$0xff]
    %v1433 = vld [vmem:[#allocation3 + $0x40] sm:$0xff]
    %v1434 = vld [vmem:[#allocation3 + $0x48] sm:$0xff]
    %v1435 = vld [vmem:[#allocation3 + $0x50] sm:$0xff]
    %v1436 = vld [vmem:[#allocation3 + $0x58] sm:$0xff]
    %v1437 = vld [vmem:[#allocation3 + $0x60] sm:$0xff]
    %v1438 = vld [vmem:[#allocation3 + $0x68] sm:$0xff]
    %v1439 = vld [vmem:[#allocation3 + $0x70] sm:$0xff]
    %v1440 = vld [vmem:[#allocation3 + $0x78] sm:$0xff]
    %v1441 = vld [vmem:[#allocation3 + $0x80] sm:$0xff]
    %v1442 = vld [vmem:[#allocation3 + $0x88] sm:$0xff]
    %v1443 = vld [vmem:[#allocation3 + $0x90] sm:$0xff]
    %v1444 = vld [vmem:[#allocation3 + $0x98] sm:$0xff]
    %v1445 = vld [vmem:[#allocation3 + $0xa0] sm:$0xff]
    %v1446 = vld [vmem:[#allocation3 + $0xa8] sm:$0xff]
    %v1447 = vld [vmem:[#allocation3 + $0xb0] sm:$0xff]
    %v1448 = vld [vmem:[#allocation3 + $0xb8] sm:$0xff]
    %v1449 = vld [vmem:[#allocation3 + $0xc0] sm:$0xff]
    %v1450 = vld [vmem:[#allocation3 + $0xc8] sm:$0xff]
    %v1451 = vld [vmem:[#allocation3 + $0xd0] sm:$0xff]
    %v1452 = vld [vmem:[#allocation3 + $0xd8] sm:$0xff]
    %v1453 = vld [vmem:[#allocation3 + $0xe0] sm:$0xff]
    %v1454 = vld [vmem:[#allocation3 + $0xe8] sm:$0xff]
    %v1455 = vld [vmem:[#allocation3 + $0xf0] sm:$0xff]
    %v1456 = vld [vmem:[#allocation3 + $0xf8] sm:$0xff]
    %v1457 = vld [vmem:[#allocation3 + $0x100] sm:$0xff]
    %v1458 = vld [vmem:[#allocation3 + $0x108] sm:$0xff]
    %v1459 = vld [vmem:[#allocation3 + $0x110] sm:$0xff]
    %v1460 = vld [vmem:[#allocation3 + $0x118] sm:$0xff]
    %v1462 = vsel %vm784, %v1424, 0
    %1464 = vmatpush.msra.mxu0 0.0
    %1465 = vmatpush.msra.mxu0 0.0
    %1466 = vmatpush.msra.mxu0 0.0
    %1467 = vmatpush.msra.mxu0 0.0
    %1468 = vmatpush.msra.mxu0 0.0
    %1469 = vmatpush.msra.mxu0 0.0
    %1470 = vmatpush.msra.mxu0 0.0
    %1471 = vmatpush.msra.mxu0 %v1457
    %1472 = vmatpush.msra.mxu0 %v1453
    %1473 = vmatpush.msra.mxu0 %v1449
    %1474 = vmatpush.msra.mxu0 %v1445
    %1475 = vmatpush.msra.mxu0 %v1441
    %1476 = vmatpush.msra.mxu0 %v1437
    %1477 = vmatpush.msra.mxu0 %v1433
    %1478 = vmatpush.msra.mxu0 %v1429
    %1479 = vmatpush.msra.mxu0 %v1425
    %1480 = vmatmul.f32.gmra.mxu0 %v1462
    %v1481 = vpop.f32.mrf.mxu0
    %v1482 = vadd.f32 0.0, %v1481
    %1483 = vdwg.mxu0
    %1484 = vmatpush.msra.mxu0 0.0
    %1485 = vmatpush.msra.mxu0 0.0
    %1486 = vmatpush.msra.mxu0 0.0
    %1487 = vmatpush.msra.mxu0 0.0
    %1488 = vmatpush.msra.mxu0 0.0
    %1489 = vmatpush.msra.mxu0 0.0
    %1490 = vmatpush.msra.mxu0 0.0
    %1491 = vmatpush.msra.mxu0 %v1458
    %1492 = vmatpush.msra.mxu0 %v1454
    %1493 = vmatpush.msra.mxu0 %v1450
    %1494 = vmatpush.msra.mxu0 %v1446
    %1495 = vmatpush.msra.mxu0 %v1442
    %1496 = vmatpush.msra.mxu0 %v1438
    %1497 = vmatpush.msra.mxu0 %v1434
    %1498 = vmatpush.msra.mxu0 %v1430
    %1499 = vmatpush.msra.mxu0 %v1426
    %1500 = vmatmul.f32.gmra.mxu0 %v1462
    %v1501 = vpop.f32.mrf.mxu0
    %v1502 = vadd.f32 0.0, %v1501
    %1503 = vdwg.mxu0
    %1504 = vmatpush.msra.mxu0 0.0
    %1505 = vmatpush.msra.mxu0 0.0
    %1506 = vmatpush.msra.mxu0 0.0
    %1507 = vmatpush.msra.mxu0 0.0
    %1508 = vmatpush.msra.mxu0 0.0
    %1509 = vmatpush.msra.mxu0 0.0
    %1510 = vmatpush.msra.mxu0 0.0
    %1511 = vmatpush.msra.mxu0 %v1459
    %1512 = vmatpush.msra.mxu0 %v1455
    %1513 = vmatpush.msra.mxu0 %v1451
    %1514 = vmatpush.msra.mxu0 %v1447
    %1515 = vmatpush.msra.mxu0 %v1443
    %1516 = vmatpush.msra.mxu0 %v1439
    %1517 = vmatpush.msra.mxu0 %v1435
    %1518 = vmatpush.msra.mxu0 %v1431
    %1519 = vmatpush.msra.mxu0 %v1427
    %1520 = vmatmul.f32.gmra.mxu0 %v1462
    %v1521 = vpop.f32.mrf.mxu0
    %v1522 = vadd.f32 0.0, %v1521
    %1523 = vdwg.mxu0
    %1524 = vmatpush.msra.mxu0 0.0
    %1525 = vmatpush.msra.mxu0 0.0
    %1526 = vmatpush.msra.mxu0 0.0
    %1527 = vmatpush.msra.mxu0 0.0
    %1528 = vmatpush.msra.mxu0 0.0
    %1529 = vmatpush.msra.mxu0 0.0
    %1530 = vmatpush.msra.mxu0 0.0
    %1531 = vmatpush.msra.mxu0 %v1460
    %1532 = vmatpush.msra.mxu0 %v1456
    %1533 = vmatpush.msra.mxu0 %v1452
    %1534 = vmatpush.msra.mxu0 %v1448
    %1535 = vmatpush.msra.mxu0 %v1444
    %1536 = vmatpush.msra.mxu0 %v1440
    %1537 = vmatpush.msra.mxu0 %v1436
    %1538 = vmatpush.msra.mxu0 %v1432
    %1539 = vmatpush.msra.mxu0 %v1428
    %1540 = vmatmul.f32.gmra.mxu0 %v1462
    %v1541 = vpop.f32.mrf.mxu0
    %v1542 = vadd.f32 0.0, %v1541
    %1543 = vdwg.mxu0
    %v1544 = vsel %vm868, %v1482, 0.0
    %v1545 = vsel %vm868, %v1502, 0.0
    %v1546 = vadd.f32 %v1544, %v1545
    %v1547 = vsel %vm868, %v1522, 0.0
    %v1548 = vadd.f32 %v1546, %v1547
    %v1549 = vsel %vm868, %v1542, 0.0
    %v1550 = vadd.f32 %v1548, %v1549
    %1551 = vadd.xlane.f32.xlu0 %v1550
    %v1552 = vpop.xlane.xlu0 %1551
    %v1553 = vmul.f32 %v1552, %v884
    %v1554 = vsub.f32 %v1482, %v1553
    %v1555 = vsub.f32 %v1502, %v1553
    %v1556 = vsub.f32 %v1522, %v1553
    %v1557 = vsub.f32 %v1542, %v1553
    %v1558 = vmul.f32 %v1554, %v1554
    %v1559 = vmul.f32 %v1555, %v1555
    %v1560 = vmul.f32 %v1556, %v1556
    %v1561 = vmul.f32 %v1557, %v1557
    %v1562 = vsel %vm868, %v1558, 0.0
    %v1563 = vsel %vm868, %v1559, 0.0
    %v1564 = vadd.f32 %v1562, %v1563
    %v1565 = vsel %vm868, %v1560, 0.0
    %v1566 = vadd.f32 %v1564, %v1565
    %v1567 = vsel %vm868, %v1561, 0.0
    %v1568 = vadd.f32 %v1566, %v1567
    %1569 = vadd.xlane.f32.xlu0 %v1568
    %v1570 = vpop.xlane.xlu0 %1569
    %v1571 = vmul.f32 %v1570, %v884
    %v1572 = vld [vmem:[%s8] sm:$0xf]
    %v1573 = vadd.f32 %v1571, 1e-05
    %v1574 = vrsqrt.pop %v1573
    %v1575 = vmul.f32 %v1574, %v1573
    %v1576 = vmul.f32 %v1575, %v1574
    %v1577 = vmul.f32 0.5, %v1576
    %v1578 = vsub.f32 1.5, %v1577
    %v1579 = vmul.f32 %v1574, %v1578
    %vm1580 = vweird.f32 %v1573
    %vm1581 = vweird.f32 %v1574
    %vm1582 = vmor %vm1580, %vm1581
    %v1583 = vsel %vm1582, %v1574, %v1579
    %v1584 = vmul.f32 %v1572, %v1583
    %1586 = vset.pattern.permute.xlu0 0
    %1587 = vperm.xlu0 %1586, %v1584
    %v1588 = vpop.permute.xlu0 %1587
    %v1590 = vmul.f32 %v1554, %v1588
    %v1591 = vmul.f32 %v1555, %v1588
    %v1592 = vmul.f32 %v1556, %v1588
    %v1593 = vmul.f32 %v1557, %v1588
    %v1594 = vld [vmem:[%s9] sm:$0xf]
    %1596 = vset.pattern.permute.xlu0 0
    %1597 = vperm.xlu0 %1596, %v1594
    %v1598 = vpop.permute.xlu0 %1597
    %v1600 = vadd.f32 %v1590, %v1598
    %v1601 = vadd.f32 %v1591, %v1598
    %v1602 = vadd.f32 %v1592, %v1598
    %v1603 = vadd.f32 %v1593, %v1598
    %v1604 = vmax.f32 %v1600, 0.0
    %v1605 = vmax.f32 %v1601, 0.0
    %v1606 = vmax.f32 %v1602, 0.0
    %v1607 = vmax.f32 %v1603, 0.0
    %v1612 = vrot.slane %v1605, 4
    %v1613 = vrot.slane %v1607, 4
    %v1614 = vsel %vm868, %v1604, %v1612
    %v1615 = vsel %vm868, %v1606, %v1613
    %1618 = vst [vmem:[#allocation10] sm:$0xff] %v1614
    %1619 = vst [vmem:[#allocation10 + $0x8] sm:$0xff] %v1615
    // Predicated region
    $region54: #{tpu_custom_call.1} parent=1 // pred_check
      _
    $region55: #{tpu_custom_call.1} parent=1 // pred_check_branch
      %1621 = sbr.rel (0) target = $region57
    $region56: #{tpu_custom_call.1} parent=1 // pred_region
      %1623 = vsyncadd [#allocation6], 0
      %s1625 = sshll.u32 [#allocation10], 4
      %s1626 = int_to_ptr.vmem [resolvable:$true] %s1625
      %s1627 = sshll.u32 %s10, 4
      %s1628 = int_to_ptr.hbm [resolvable:$true] %s1627
      %1630 = dma.vmem_to_hbm [thread:$0]  %s1626, 256, %s1628, [#allocation6]
    $region57: #{tpu_custom_call.1} parent=1 // pred_fallthru
      _
    // Predicated region
    $region58: #{tpu_custom_call.1} parent=1 // pred_check
      _
    $region59: #{tpu_custom_call.1} parent=1 // pred_check_branch
      %1632 = sbr.rel (0) target = $region61
    $region60: #{tpu_custom_call.1} parent=1 // pred_region
      %1634 = dma.done [#allocation6], 256
    $region61: #{tpu_custom_call.1} parent=1 // pred_fallthru
      _
    %1635 = vsyncpa [#allocation5], 1
    %1636 = vsyncpa [#allocation8], 1
    %1637 = vsyncpa [#allocation6], 1

</llo_original>
